<compile_context>
chip_gen: v6e
topology: v6e:2x2x1
jax: 0.10.0
libtpu: 0.0.40
codegen_flags: <defaults>
</compile_context>

<pallas_src>
import functools

import jax
import jax.numpy as jnp
import numpy as np
from jax import lax
from jax.experimental import pallas as pl
from jax.experimental.pallas import tpu as pltpu


def _make_kernel(C, TH, Wp):
    """Fused residual block for one (image, row-band) grid step.

    Layout: activations are (C, rows*Wp) with the flattened padded plane on
    the lane axis.  The HBM input carries a 3-row top/bottom halo and a 1-col
    left halo (right cols zero-filled up to Wp), so every 3x3 tap of every
    *kept* output element is a static in-range lane slice.
    """
    R = TH + 6                 # window rows (band + 3-row halo each side)
    L = R * Wp                 # flattened window length
    L1 = (TH + 2) * Wp         # conv1 output: window rows [2, TH+4)
    L2 = TH * Wp               # conv2 output: window rows [3, TH+3) == band
    C9 = 9 * C                 # contraction depth with all 9 taps folded in

    def conv_slab(a, out_len):
        # a: (C, len) flattened activations.  Tap (dy, dx) of output element
        # p reads a[:, p + (2+dy)*Wp + dx]; all offsets are static, in-range
        # lane slices (cheap shifts), concatenated along K -> (9C, out_len).
        parts = []
        for dy in (-1, 0, 1):
            for dx in (-1, 0, 1):
                s0 = (2 + dy) * Wp + dx
                parts.append(a[:, s0:s0 + out_len])
        return jnp.concatenate(parts, axis=0)

    def kernel(x_hbm, w1_ref, b1_ref, w2_ref, b2_ref, mask_ref, o_ref,
               xwin_ref, y1_ref, sem):
        n = pl.program_id(0)
        b = pl.program_id(1)
        nb = pl.num_programs(1)
        slot = b % 2

        def window_copy(band, s):
            start = pl.multiple_of(band * (TH * Wp), Wp)
            return pltpu.make_async_copy(
                x_hbm.at[n, :, pl.ds(start, L)], xwin_ref.at[s], sem.at[s])

        # Prime the pipeline at the start of every image (megacore-safe: each
        # core primes the images it owns) ...
        @pl.when(b == 0)
        def _():
            window_copy(b, slot).start()

        # ... and prefetch the next band of this image behind this band's
        # compute (double-buffered window; one exposed DMA per image only).
        @pl.when(b + 1 < nb)
        def _():
            window_copy(b + 1, (b + 1) % 2).start()

        window_copy(b, slot).wait()

        xw = xwin_ref[slot]                       # (C, L) f32
        xb = xw.astype(jnp.bfloat16)              # MXU operands in bf16

        # ---- conv1 + bias + ReLU over window rows [2, TH+4) ----------------
        z1 = jnp.dot(w1_ref[...], conv_slab(xb, L1),
                     preferred_element_type=jnp.float32)          # (C, L1) f32
        # mask zeroes y1's SAME-padding columns (col 0 and cols > W); it is a
        # preloaded constant -> single VPU multiply, no iota/compare per step.
        y1 = jnp.maximum(z1 + b1_ref[...], 0.0) * mask_ref[...]
        # y1 buffer covers window rows [1, TH+5); conv1 result -> offset Wp.
        y1_ref[:, pl.ds(Wp, L1)] = y1.astype(jnp.bfloat16)

        zrow = jnp.zeros((C, Wp), jnp.bfloat16)
        y1_ref[:, pl.ds(0, Wp)] = zrow                 # only cropped cols read
        y1_ref[:, pl.ds((TH + 3) * Wp, Wp)] = zrow     # only cropped cols read

        # conv2's SAME zero-padding rows of y1 at the image top/bottom.
        @pl.when(b == 0)
        def _():
            y1_ref[:, pl.ds(Wp, Wp)] = zrow            # window row 2

        @pl.when(b == nb - 1)
        def _():
            y1_ref[:, pl.ds((TH + 2) * Wp, Wp)] = zrow  # window row TH+3

        # ---- conv2 + bias over window rows [3, TH+3), then residual --------
        z2 = jnp.dot(w2_ref[...], conv_slab(y1_ref[...], L2),
                     preferred_element_type=jnp.float32)          # (C, L2) f32
        o_ref[0] = z2 + b2_ref[...] + xw[:, 3 * Wp:(TH + 3) * Wp]

    return kernel


def _pick_band_rows(H, target=32):
    # Prefer the largest divisor of H that is a multiple of 8 (sublane-aligned
    # row offsets -> clean DMA descriptors) and <= target; else largest divisor.
    divs = [d for d in range(1, min(H, target) + 1) if H % d == 0]
    mult8 = [d for d in divs if d % 8 == 0]
    return (mult8 or divs)[-1]


@functools.partial(jax.jit, static_argnames=("band_rows",))
def residual_block_nobn(x_nchw, w1_oihw, b1, w2_oihw, b2, *, band_rows=None):
    """Forward of ResidualBlock_noBN. x_nchw: (N, C, H, W) float32."""
    N, C, H, W = x_nchw.shape
    TH = band_rows if band_rows is not None else _pick_band_rows(H)
    assert H % TH == 0, "band_rows must divide H"   # TODO(synk): pad H instead
    nbands = H // TH
    Wp = ((W + 2 + 127) // 128) * 128   # lane-dense padded width (>= W+2)
    R = TH + 6
    L = R * Wp
    L1 = (TH + 2) * Wp
    L2 = TH * Wp
    C9 = 9 * C

    # NCHW stays NCHW (plane on the lane axis): 3-row halo, 1 left zero col,
    # zero-fill right cols to Wp, then flatten (H+6, Wp) -> (H+6)*Wp.
    # TODO(synk): ship x/out as bf16 to halve HBM bytes on v5e (kept f32 here
    # for full-precision residual add and tight test tolerance).
    xpad = jnp.pad(x_nchw, ((0, 0), (0, 0), (3, 3), (1, Wp - W - 1)))
    x_flat = xpad.reshape(N, C, (H + 6) * Wp)

    # OIHW -> (Cout, kh, kw, Cin) -> (Cout, 9*Cin), bf16 for the MXU.
    w1m = jnp.transpose(w1_oihw, (0, 2, 3, 1)).reshape(C, C9).astype(jnp.bfloat16)
    w2m = jnp.transpose(w2_oihw, (0, 2, 3, 1)).reshape(C, C9).astype(jnp.bfloat16)
    b1r = b1.reshape(C, 1).astype(jnp.float32)
    b2r = b2.reshape(C, 1).astype(jnp.float32)

    # y1 SAME-padding column mask (keep cols 1..W), tiled over the TH+2
    # conv1 output rows.  Precomputed once in HBM, loaded once.
    col = jnp.arange(Wp, dtype=jnp.int32)
    row_mask = ((col >= 1) & (col <= W)).astype(jnp.float32)
    mask = jnp.tile(row_mask, (TH + 2,)).reshape(1, L1)

    kernel = _make_kernel(C, TH, Wp)

    # VMEM footprint (per core) with headroom; keep well under v7x's 64 MiB.
    vmem_bytes = (2 * C * L * 4                 # x window double buffer (f32)
                  + C * (TH + 4) * Wp * 2       # y1 (bf16)
                  + 2 * C9 * L1 * 2             # conv1 slab + xb temp (bf16)
                  + C9 * L2 * 2                 # conv2 slab (bf16)
                  + 2 * C * L2 * 4              # output block double buffer
                  + 2 * (C * C9 * 2 + C * 4) + L1 * 4)
    vmem_limit = int(min(max(4 * vmem_bytes, 8 << 20), 40 << 20))

    flops = N * nbands * 2 * C9 * C * (L1 + L2)
    bytes_accessed = 4 * (N * nbands * C * L + N * C * H * Wp) \
        + 2 * 2 * C * C9 + 4 * (2 * C + L1)

    # TODO(synk): if N == 1 on v7x, split the band axis across the two
    # TensorCores instead (here only the image axis is 'parallel').
    out_flat = pl.pallas_call(
        kernel,
        out_shape=jax.ShapeDtypeStruct((N, C, H * Wp), jnp.float32),
        grid=(N, nbands),
        in_specs=[
            pl.BlockSpec(memory_space=pl.ANY),               # x (HBM, manual DMA)
            pl.BlockSpec((C, C9), lambda n, b: (0, 0)),      # w1
            pl.BlockSpec((C, 1), lambda n, b: (0, 0)),       # b1
            pl.BlockSpec((C, C9), lambda n, b: (0, 0)),      # w2
            pl.BlockSpec((C, 1), lambda n, b: (0, 0)),       # b2
            pl.BlockSpec((1, L1), lambda n, b: (0, 0)),      # y1 column mask
        ],
        out_specs=pl.BlockSpec((1, C, L2), lambda n, b: (n, 0, b)),
        scratch_shapes=[
            pltpu.VMEM((2, C, L), jnp.float32),              # x window, 2 slots
            pltpu.VMEM((C, (TH + 4) * Wp), jnp.bfloat16),    # y1 (+1 pad row each side)
            pltpu.SemaphoreType.DMA((2,)),
        ],
        compiler_params=pltpu.CompilerParams(
            dimension_semantics=("parallel", "arbitrary"),
            vmem_limit_bytes=vmem_limit,
        ),
        cost_estimate=pl.CostEstimate(
            flops=flops, transcendentals=0, bytes_accessed=bytes_accessed),
    )(x_flat, w1m, b1r, w2m, b2r, mask)

    # Lane-dense store in the kernel; crop the column halo here.
    out = out_flat.reshape(N, C, H, Wp)[:, :, :, 1:W + 1]
    return out


def init_conv_params(key, c, scale=0.1):
    """kaiming_normal_(a=0, mode='fan_in') then *= scale; bias = 0.  OIHW."""
    fan_in = c * 3 * 3
    std = np.sqrt(2.0 / fan_in) * scale
    w_oihw = jax.random.normal(key, (c, c, 3, 3), jnp.float32) * std
    b = jnp.zeros((c,), jnp.float32)
    return w_oihw, b


def reference_forward(x_nchw, w1_oihw, b1, w2_oihw, b2):
    """Pure-JAX reference (lax conv, f32) for the correctness check."""
    dn = ("NCHW", "OIHW", "NCHW")
    y1 = lax.conv_general_dilated(x_nchw, w1_oihw, (1, 1), "SAME",
                                  dimension_numbers=dn)
    y1 = jnp.maximum(y1 + b1.reshape(1, -1, 1, 1), 0.0)
    y2 = lax.conv_general_dilated(y1, w2_oihw, (1, 1), "SAME",
                                  dimension_numbers=dn)
    y2 = y2 + b2.reshape(1, -1, 1, 1)
    return x_nchw + y2


if __name__ == "__main__":
    key = jax.random.PRNGKey(0)
    kx, k1, k2 = jax.random.split(key, 3)

    N, C, H, W = 2, 4, 16, 16
    x = jax.random.normal(kx, (N, C, H, W), jnp.float32)

    w1, b1 = init_conv_params(k1, C, scale=0.1)
    w2, b2 = init_conv_params(k2, C, scale=0.1)

    # band_rows=8 -> 2 row bands per image, exercising the halo / prefetch logic.
    out = residual_block_nobn(x, w1, b1, w2, b2, band_rows=8)
    out = jax.block_until_ready(out)

    ref = reference_forward(x, w1, b1, w2, b2)
    # bf16 MXU operands vs f32 reference -> slightly loosened tolerance.
    np.testing.assert_allclose(np.asarray(out), np.asarray(ref),
                               rtol=1e-2, atol=1e-2)

    assert out.shape == (N, C, H, W) and out.dtype == jnp.float32
    print("KERNEL_OK")
</pallas_src>

<mosaic_0001>
module attributes {stable_mosaic.version = 11 : i64} {
  func.func @kernel(%arg0: i32, %arg1: i32, %arg2: memref<2x4x2816xf32, #tpu.memory_space<any>>, %arg3: memref<4x36xbf16, #tpu.memory_space<vmem>>, %arg4: memref<4x1xf32, #tpu.memory_space<vmem>>, %arg5: memref<4x36xbf16, #tpu.memory_space<vmem>>, %arg6: memref<4x1xf32, #tpu.memory_space<vmem>>, %arg7: memref<1x1280xf32, #tpu.memory_space<vmem>>, %arg8: memref<1x4x1024xf32, #tpu.memory_space<vmem>>, %arg9: memref<2x4x1792xf32, #tpu.memory_space<vmem>>, %arg10: memref<4x1536xbf16, #tpu.memory_space<vmem>>, %arg11: memref<2x!tpu.dma_semaphore, #tpu.memory_space<semaphore_mem>>) attributes {dimension_semantics = [#tpu.dimension_semantics<parallel>, #tpu.dimension_semantics<arbitrary>], iteration_bounds = array<i64: 2, 2>, scalar_prefetch = 0 : i64, scratch_operands = 3 : i64, tpu.core_type = #tpu.core_type<tc>, window_params = [{}, {pipeline_mode = #tpu.pipeline_mode<synchronous>, transform_indices = @transform_1, window_bounds = array<i64: 4, 36>}, {pipeline_mode = #tpu.pipeline_mode<synchronous>, transform_indices = @transform_2, window_bounds = array<i64: 4, 1>}, {pipeline_mode = #tpu.pipeline_mode<synchronous>, transform_indices = @transform_3, window_bounds = array<i64: 4, 36>}, {pipeline_mode = #tpu.pipeline_mode<synchronous>, transform_indices = @transform_4, window_bounds = array<i64: 4, 1>}, {pipeline_mode = #tpu.pipeline_mode<synchronous>, transform_indices = @transform_5, window_bounds = array<i64: 1, 1280>}, {transform_indices = @transform_6, window_bounds = array<i64: 1, 4, 1024>}]} {
    %c2_i32 = arith.constant 2 : i32
    %c0_i32 = arith.constant 0 : i32
    %0 = arith.cmpi eq, %c2_i32, %c0_i32 : i32
    %c1_i32 = arith.constant 1 : i32
    %1 = arith.select %0, %c1_i32, %c2_i32 : i32
    %2 = arith.remsi %arg1, %1 : i32
    %c0_i32_0 = arith.constant 0 : i32
    %3 = arith.cmpi ne, %2, %c0_i32_0 : i32
    %c0_i32_1 = arith.constant 0 : i32
    %4 = arith.cmpi slt, %2, %c0_i32_1 : i32
    %c0_i32_2 = arith.constant 0 : i32
    %5 = arith.cmpi slt, %1, %c0_i32_2 : i32
    %6 = arith.xori %4, %5 : i1
    %7 = arith.andi %6, %3 : i1
    %8 = arith.addi %2, %1 : i32
    %9 = arith.select %7, %8, %2 : i32
    %c0_i32_3 = arith.constant 0 : i32
    %10 = arith.cmpi eq, %arg1, %c0_i32_3 : i32
    %11 = arith.extui %10 : i1 to i32
    %c0_i32_4 = arith.constant 0 : i32
    %12 = arith.cmpi ne, %11, %c0_i32_4 : i32
    scf.if %12 {
      %c1024_i32_38 = arith.constant 1024 : i32
      %81 = arith.muli %arg1, %c1024_i32_38 : i32
      %82 = tpu.assume_multiple %81, 128 : i32
      %c0_i32_39 = arith.constant 0 : i32
      %83 = tpu.memref_slice %arg2[%arg0, %c0_i32_39, %82] : memref<2x4x2816xf32, #tpu.memory_space<any>> -> memref<1x4x1792xf32, #tpu.memory_space<any>>
      %84 = tpu.memref_squeeze %83 : memref<1x4x1792xf32, #tpu.memory_space<any>> -> memref<4x1792xf32, #tpu.memory_space<any>>
      %c0_i32_40 = arith.constant 0 : i32
      %c0_i32_41 = arith.constant 0 : i32
      %85 = tpu.memref_slice %arg9[%9, %c0_i32_40, %c0_i32_41] : memref<2x4x1792xf32, #tpu.memory_space<vmem>> -> memref<1x4x1792xf32, #tpu.memory_space<vmem>>
      %86 = tpu.memref_squeeze %85 : memref<1x4x1792xf32, #tpu.memory_space<vmem>> -> memref<4x1792xf32, #tpu.memory_space<vmem>>
      %87 = tpu.memref_slice %arg11[%9] : memref<2x!tpu.dma_semaphore, #tpu.memory_space<semaphore_mem>> -> memref<1x!tpu.dma_semaphore, #tpu.memory_space<semaphore_mem>>
      %88 = tpu.memref_squeeze %87 : memref<1x!tpu.dma_semaphore, #tpu.memory_space<semaphore_mem>> -> memref<!tpu.dma_semaphore, #tpu.memory_space<semaphore_mem>>
      tpu.enqueue_dma source(%84 : memref<4x1792xf32, #tpu.memory_space<any>>) target(%86 : memref<4x1792xf32, #tpu.memory_space<vmem>>) target_semaphore(%88 : memref<!tpu.dma_semaphore, #tpu.memory_space<semaphore_mem>>)
    } else {
    }
    %c1_i32_5 = arith.constant 1 : i32
    %13 = arith.addi %arg1, %c1_i32_5 : i32
    %c2_i32_6 = arith.constant 2 : i32
    %14 = arith.cmpi slt, %13, %c2_i32_6 : i32
    %15 = arith.extui %14 : i1 to i32
    %c0_i32_7 = arith.constant 0 : i32
    %16 = arith.cmpi ne, %15, %c0_i32_7 : i32
    scf.if %16 {
      %c1_i32_38 = arith.constant 1 : i32
      %81 = arith.addi %arg1, %c1_i32_38 : i32
      %c1_i32_39 = arith.constant 1 : i32
      %82 = arith.addi %arg1, %c1_i32_39 : i32
      %c2_i32_40 = arith.constant 2 : i32
      %c0_i32_41 = arith.constant 0 : i32
      %83 = arith.cmpi eq, %c2_i32_40, %c0_i32_41 : i32
      %c1_i32_42 = arith.constant 1 : i32
      %84 = arith.select %83, %c1_i32_42, %c2_i32_40 : i32
      %85 = arith.remsi %82, %84 : i32
      %c0_i32_43 = arith.constant 0 : i32
      %86 = arith.cmpi ne, %85, %c0_i32_43 : i32
      %c0_i32_44 = arith.constant 0 : i32
      %87 = arith.cmpi slt, %85, %c0_i32_44 : i32
      %c0_i32_45 = arith.constant 0 : i32
      %88 = arith.cmpi slt, %84, %c0_i32_45 : i32
      %89 = arith.xori %87, %88 : i1
      %90 = arith.andi %89, %86 : i1
      %91 = arith.addi %85, %84 : i32
      %92 = arith.select %90, %91, %85 : i32
      %c1024_i32_46 = arith.constant 1024 : i32
      %93 = arith.muli %81, %c1024_i32_46 : i32
      %94 = tpu.assume_multiple %93, 128 : i32
      %c0_i32_47 = arith.constant 0 : i32
      %95 = tpu.memref_slice %arg2[%arg0, %c0_i32_47, %94] : memref<2x4x2816xf32, #tpu.memory_space<any>> -> memref<1x4x1792xf32, #tpu.memory_space<any>>
      %96 = tpu.memref_squeeze %95 : memref<1x4x1792xf32, #tpu.memory_space<any>> -> memref<4x1792xf32, #tpu.memory_space<any>>
      %c0_i32_48 = arith.constant 0 : i32
      %c0_i32_49 = arith.constant 0 : i32
      %97 = tpu.memref_slice %arg9[%92, %c0_i32_48, %c0_i32_49] : memref<2x4x1792xf32, #tpu.memory_space<vmem>> -> memref<1x4x1792xf32, #tpu.memory_space<vmem>>
      %98 = tpu.memref_squeeze %97 : memref<1x4x1792xf32, #tpu.memory_space<vmem>> -> memref<4x1792xf32, #tpu.memory_space<vmem>>
      %99 = tpu.memref_slice %arg11[%92] : memref<2x!tpu.dma_semaphore, #tpu.memory_space<semaphore_mem>> -> memref<1x!tpu.dma_semaphore, #tpu.memory_space<semaphore_mem>>
      %100 = tpu.memref_squeeze %99 : memref<1x!tpu.dma_semaphore, #tpu.memory_space<semaphore_mem>> -> memref<!tpu.dma_semaphore, #tpu.memory_space<semaphore_mem>>
      tpu.enqueue_dma source(%96 : memref<4x1792xf32, #tpu.memory_space<any>>) target(%98 : memref<4x1792xf32, #tpu.memory_space<vmem>>) target_semaphore(%100 : memref<!tpu.dma_semaphore, #tpu.memory_space<semaphore_mem>>)
    } else {
    }
    %c1024_i32 = arith.constant 1024 : i32
    %17 = arith.muli %arg1, %c1024_i32 : i32
    %18 = tpu.assume_multiple %17, 128 : i32
    %c0_i32_8 = arith.constant 0 : i32
    %19 = tpu.memref_slice %arg2[%arg0, %c0_i32_8, %18] : memref<2x4x2816xf32, #tpu.memory_space<any>> -> memref<1x4x1792xf32, #tpu.memory_space<any>>
    %20 = tpu.memref_squeeze %19 : memref<1x4x1792xf32, #tpu.memory_space<any>> -> memref<4x1792xf32, #tpu.memory_space<any>>
    %c0_i32_9 = arith.constant 0 : i32
    %c0_i32_10 = arith.constant 0 : i32
    %21 = tpu.memref_slice %arg9[%9, %c0_i32_9, %c0_i32_10] : memref<2x4x1792xf32, #tpu.memory_space<vmem>> -> memref<1x4x1792xf32, #tpu.memory_space<vmem>>
    %22 = tpu.memref_squeeze %21 : memref<1x4x1792xf32, #tpu.memory_space<vmem>> -> memref<4x1792xf32, #tpu.memory_space<vmem>>
    %23 = tpu.memref_slice %arg11[%9] : memref<2x!tpu.dma_semaphore, #tpu.memory_space<semaphore_mem>> -> memref<1x!tpu.dma_semaphore, #tpu.memory_space<semaphore_mem>>
    %24 = tpu.memref_squeeze %23 : memref<1x!tpu.dma_semaphore, #tpu.memory_space<semaphore_mem>> -> memref<!tpu.dma_semaphore, #tpu.memory_space<semaphore_mem>>
    tpu.wait_dma2 semaphore(%24 : memref<!tpu.dma_semaphore, #tpu.memory_space<semaphore_mem>>) src(%20 : memref<4x1792xf32, #tpu.memory_space<any>>) dst(%22 : memref<4x1792xf32, #tpu.memory_space<vmem>>)
    %25 = arith.index_cast %9 : i32 to index
    %c0 = arith.constant 0 : index
    %c0_11 = arith.constant 0 : index
    %26 = vector.load %arg9[%25, %c0, %c0_11] : memref<2x4x1792xf32, #tpu.memory_space<vmem>>, vector<1x4x1792xf32>
    %27 = vector.shape_cast %26 : vector<1x4x1792xf32> to vector<4x1792xf32>
    %28 = arith.truncf %27 : vector<4x1792xf32> to vector<4x1792xbf16>
    %c0_12 = arith.constant 0 : index
    %c0_13 = arith.constant 0 : index
    %29 = vector.load %arg3[%c0_12, %c0_13] : memref<4x36xbf16, #tpu.memory_space<vmem>>, vector<4x36xbf16>
    %30 = vector.extract_strided_slice %28 {offsets = [0, 127], sizes = [4, 1280], strides = [1, 1]} : vector<4x1792xbf16> to vector<4x1280xbf16>
    %31 = vector.extract_strided_slice %28 {offsets = [0, 128], sizes = [4, 1280], strides = [1, 1]} : vector<4x1792xbf16> to vector<4x1280xbf16>
    %32 = vector.extract_strided_slice %28 {offsets = [0, 129], sizes = [4, 1280], strides = [1, 1]} : vector<4x1792xbf16> to vector<4x1280xbf16>
    %33 = vector.extract_strided_slice %28 {offsets = [0, 255], sizes = [4, 1280], strides = [1, 1]} : vector<4x1792xbf16> to vector<4x1280xbf16>
    %34 = vector.extract_strided_slice %28 {offsets = [0, 256], sizes = [4, 1280], strides = [1, 1]} : vector<4x1792xbf16> to vector<4x1280xbf16>
    %35 = vector.extract_strided_slice %28 {offsets = [0, 257], sizes = [4, 1280], strides = [1, 1]} : vector<4x1792xbf16> to vector<4x1280xbf16>
    %36 = vector.extract_strided_slice %28 {offsets = [0, 383], sizes = [4, 1280], strides = [1, 1]} : vector<4x1792xbf16> to vector<4x1280xbf16>
    %37 = vector.extract_strided_slice %28 {offsets = [0, 384], sizes = [4, 1280], strides = [1, 1]} : vector<4x1792xbf16> to vector<4x1280xbf16>
    %38 = vector.extract_strided_slice %28 {offsets = [0, 385], sizes = [4, 1280], strides = [1, 1]} : vector<4x1792xbf16> to vector<4x1280xbf16>
    %39 = tpu.concatenate %30, %31, %32, %33, %34, %35, %36, %37, %38 in 0 : vector<4x1280xbf16>, vector<4x1280xbf16>, vector<4x1280xbf16>, vector<4x1280xbf16>, vector<4x1280xbf16>, vector<4x1280xbf16>, vector<4x1280xbf16>, vector<4x1280xbf16>, vector<4x1280xbf16> -> vector<36x1280xbf16>
    %cst = arith.constant dense<0.000000e+00> : vector<4x1280xf32>
    %40 = tpu.matmul %29, %39, %cst {dimension_numbers = #tpu.dot_dimension_numbers<[1], [0], [0], [1], [0, 0, 1, 1], [], []>} : vector<4x36xbf16>, vector<36x1280xbf16>, vector<4x1280xf32> -> vector<4x1280xf32>
    %c0_14 = arith.constant 0 : index
    %c0_15 = arith.constant 0 : index
    %41 = vector.load %arg4[%c0_14, %c0_15] : memref<4x1xf32, #tpu.memory_space<vmem>>, vector<4x1xf32>
    %42 = vector.broadcast %41 : vector<4x1xf32> to vector<4x1280xf32>
    %43 = arith.addf %40, %42 : vector<4x1280xf32>
    %cst_16 = arith.constant 0.000000e+00 : f32
    %44 = vector.broadcast %cst_16 : f32 to vector<4x1280xf32>
    %45 = arith.maximumf %43, %44 : vector<4x1280xf32>
    %c0_17 = arith.constant 0 : index
    %c0_18 = arith.constant 0 : index
    %46 = vector.load %arg7[%c0_17, %c0_18] : memref<1x1280xf32, #tpu.memory_space<vmem>>, vector<1x1280xf32>
    %47 = vector.broadcast %46 : vector<1x1280xf32> to vector<4x1280xf32>
    %48 = arith.mulf %45, %47 : vector<4x1280xf32>
    %49 = arith.truncf %48 : vector<4x1280xf32> to vector<4x1280xbf16>
    %c0_19 = arith.constant 0 : index
    %c128 = arith.constant 128 : index
    %50 = vector.load %arg10[%c0_19, %c128] : memref<4x1536xbf16, #tpu.memory_space<vmem>>, vector<4x1280xbf16>
    tpu.vector_store %arg10[%c0_19, %c128], %49 {strides = array<i32>} : memref<4x1536xbf16, #tpu.memory_space<vmem>>, vector<4x1280xbf16>,
    %cst_20 = arith.constant 0.000000e+00 : bf16
    %51 = vector.broadcast %cst_20 : bf16 to vector<4x128xbf16>
    %c0_21 = arith.constant 0 : index
    %c0_22 = arith.constant 0 : index
    %52 = vector.load %arg10[%c0_21, %c0_22] : memref<4x1536xbf16, #tpu.memory_space<vmem>>, vector<4x128xbf16>
    tpu.vector_store %arg10[%c0_21, %c0_22], %51 {strides = array<i32>} : memref<4x1536xbf16, #tpu.memory_space<vmem>>, vector<4x128xbf16>,
    %c0_23 = arith.constant 0 : index
    %c1408 = arith.constant 1408 : index
    %53 = vector.load %arg10[%c0_23, %c1408] : memref<4x1536xbf16, #tpu.memory_space<vmem>>, vector<4x128xbf16>
    tpu.vector_store %arg10[%c0_23, %c1408], %51 {strides = array<i32>} : memref<4x1536xbf16, #tpu.memory_space<vmem>>, vector<4x128xbf16>,
    %c0_i32_24 = arith.constant 0 : i32
    %54 = arith.cmpi eq, %arg1, %c0_i32_24 : i32
    %55 = arith.extui %54 : i1 to i32
    %c0_i32_25 = arith.constant 0 : i32
    %56 = arith.cmpi ne, %55, %c0_i32_25 : i32
    scf.if %56 {
      %c0_38 = arith.constant 0 : index
      %c128_39 = arith.constant 128 : index
      %81 = vector.load %arg10[%c0_38, %c128_39] : memref<4x1536xbf16, #tpu.memory_space<vmem>>, vector<4x128xbf16>
      tpu.vector_store %arg10[%c0_38, %c128_39], %51 {strides = array<i32>} : memref<4x1536xbf16, #tpu.memory_space<vmem>>, vector<4x128xbf16>,
    } else {
    }
    %c1_i32_26 = arith.constant 1 : i32
    %57 = arith.cmpi eq, %arg1, %c1_i32_26 : i32
    %58 = arith.extui %57 : i1 to i32
    %c0_i32_27 = arith.constant 0 : i32
    %59 = arith.cmpi ne, %58, %c0_i32_27 : i32
    scf.if %59 {
      %c0_38 = arith.constant 0 : index
      %c1280 = arith.constant 1280 : index
      %81 = vector.load %arg10[%c0_38, %c1280] : memref<4x1536xbf16, #tpu.memory_space<vmem>>, vector<4x128xbf16>
      tpu.vector_store %arg10[%c0_38, %c1280], %51 {strides = array<i32>} : memref<4x1536xbf16, #tpu.memory_space<vmem>>, vector<4x128xbf16>,
    } else {
    }
    %c0_28 = arith.constant 0 : index
    %c0_29 = arith.constant 0 : index
    %60 = vector.load %arg5[%c0_28, %c0_29] : memref<4x36xbf16, #tpu.memory_space<vmem>>, vector<4x36xbf16>
    %c0_30 = arith.constant 0 : index
    %c0_31 = arith.constant 0 : index
    %61 = vector.load %arg10[%c0_30, %c0_31] : memref<4x1536xbf16, #tpu.memory_space<vmem>>, vector<4x1536xbf16>
    %62 = vector.extract_strided_slice %61 {offsets = [0, 127], sizes = [4, 1024], strides = [1, 1]} : vector<4x1536xbf16> to vector<4x1024xbf16>
    %63 = vector.extract_strided_slice %61 {offsets = [0, 128], sizes = [4, 1024], strides = [1, 1]} : vector<4x1536xbf16> to vector<4x1024xbf16>
    %64 = vector.extract_strided_slice %61 {offsets = [0, 129], sizes = [4, 1024], strides = [1, 1]} : vector<4x1536xbf16> to vector<4x1024xbf16>
    %65 = vector.extract_strided_slice %61 {offsets = [0, 255], sizes = [4, 1024], strides = [1, 1]} : vector<4x1536xbf16> to vector<4x1024xbf16>
    %66 = vector.extract_strided_slice %61 {offsets = [0, 256], sizes = [4, 1024], strides = [1, 1]} : vector<4x1536xbf16> to vector<4x1024xbf16>
    %67 = vector.extract_strided_slice %61 {offsets = [0, 257], sizes = [4, 1024], strides = [1, 1]} : vector<4x1536xbf16> to vector<4x1024xbf16>
    %68 = vector.extract_strided_slice %61 {offsets = [0, 383], sizes = [4, 1024], strides = [1, 1]} : vector<4x1536xbf16> to vector<4x1024xbf16>
    %69 = vector.extract_strided_slice %61 {offsets = [0, 384], sizes = [4, 1024], strides = [1, 1]} : vector<4x1536xbf16> to vector<4x1024xbf16>
    %70 = vector.extract_strided_slice %61 {offsets = [0, 385], sizes = [4, 1024], strides = [1, 1]} : vector<4x1536xbf16> to vector<4x1024xbf16>
    %71 = tpu.concatenate %62, %63, %64, %65, %66, %67, %68, %69, %70 in 0 : vector<4x1024xbf16>, vector<4x1024xbf16>, vector<4x1024xbf16>, vector<4x1024xbf16>, vector<4x1024xbf16>, vector<4x1024xbf16>, vector<4x1024xbf16>, vector<4x1024xbf16>, vector<4x1024xbf16> -> vector<36x1024xbf16>
    %cst_32 = arith.constant dense<0.000000e+00> : vector<4x1024xf32>
    %72 = tpu.matmul %60, %71, %cst_32 {dimension_numbers = #tpu.dot_dimension_numbers<[1], [0], [0], [1], [0, 0, 1, 1], [], []>} : vector<4x36xbf16>, vector<36x1024xbf16>, vector<4x1024xf32> -> vector<4x1024xf32>
    %c0_33 = arith.constant 0 : index
    %c0_34 = arith.constant 0 : index
    %73 = vector.load %arg6[%c0_33, %c0_34] : memref<4x1xf32, #tpu.memory_space<vmem>>, vector<4x1xf32>
    %74 = vector.broadcast %73 : vector<4x1xf32> to vector<4x1024xf32>
    %75 = arith.addf %72, %74 : vector<4x1024xf32>
    %76 = vector.extract_strided_slice %27 {offsets = [0, 384], sizes = [4, 1024], strides = [1, 1]} : vector<4x1792xf32> to vector<4x1024xf32>
    %77 = arith.addf %75, %76 : vector<4x1024xf32>
    %c0_35 = arith.constant 0 : index
    %c0_36 = arith.constant 0 : index
    %c0_37 = arith.constant 0 : index
    %78 = vector.load %arg8[%c0_35, %c0_36, %c0_37] : memref<1x4x1024xf32, #tpu.memory_space<vmem>>, vector<1x4x1024xf32>
    %79 = vector.shape_cast %78 : vector<1x4x1024xf32> to vector<4x1024xf32>
    %80 = vector.shape_cast %77 : vector<4x1024xf32> to vector<1x4x1024xf32>
    tpu.vector_store %arg8[%c0_35, %c0_36, %c0_37], %80 {strides = array<i32>} : memref<1x4x1024xf32, #tpu.memory_space<vmem>>, vector<1x4x1024xf32>,
    return
  }
  func.func @transform_1(%arg0: i32, %arg1: i32) -> (i32, i32) {
    %c0_i32 = arith.constant 0 : i32
    %c0_i32_0 = arith.constant 0 : i32
    %c0_i32_1 = arith.constant 0 : i32
    return %c0_i32, %c0_i32_0 : i32, i32
  }
  func.func @transform_2(%arg0: i32, %arg1: i32) -> (i32, i32) {
    %c0_i32 = arith.constant 0 : i32
    %c0_i32_0 = arith.constant 0 : i32
    %c0_i32_1 = arith.constant 0 : i32
    return %c0_i32, %c0_i32_0 : i32, i32
  }
  func.func @transform_3(%arg0: i32, %arg1: i32) -> (i32, i32) {
    %c0_i32 = arith.constant 0 : i32
    %c0_i32_0 = arith.constant 0 : i32
    %c0_i32_1 = arith.constant 0 : i32
    return %c0_i32, %c0_i32_0 : i32, i32
  }
  func.func @transform_4(%arg0: i32, %arg1: i32) -> (i32, i32) {
    %c0_i32 = arith.constant 0 : i32
    %c0_i32_0 = arith.constant 0 : i32
    %c0_i32_1 = arith.constant 0 : i32
    return %c0_i32, %c0_i32_0 : i32, i32
  }
  func.func @transform_5(%arg0: i32, %arg1: i32) -> (i32, i32) {
    %c0_i32 = arith.constant 0 : i32
    %c0_i32_0 = arith.constant 0 : i32
    %c0_i32_1 = arith.constant 0 : i32
    return %c0_i32, %c0_i32_0 : i32, i32
  }
  func.func @transform_6(%arg0: i32, %arg1: i32) -> (i32, i32, i32) {
    %c0_i32 = arith.constant 0 : i32
    %c0_i32_0 = arith.constant 0 : i32
    return %arg0, %c0_i32, %arg1 : i32, i32, i32
  }
}

</mosaic_0001>

<llo_original>
// kernel: residual_block_nobn.1
$region0: #{residual_block_nobn.1}
  #allocation0 [shape = 'u32[]', space=smem, size = 0x4, offset = 0x4, fixed_abs, tag = 'smem constant byte address 0x4 - core index']
  #allocation1 [shape = 'u32[144,128]{1,0:T(1,128)}', space=vmem, size = 0x12000, scoped, tag = 'internal scratch']
  #allocation2 [shape = 'f32[2,4,1792]{2,1,0:T(4,128)}', space=vmem, size = 0xe000, scoped, tag = 'scratch operand']
  #allocation3 [shape = 'bf16[4,1536]{1,0:T(4,128)(2,1)}', space=vmem, size = 0x3000, scoped, tag = 'scratch operand']
  #allocation4 [shape = 's32[2]{0}', space=sflag, size = 0x8, scoped, tag = 'scratch operand']
  #allocation5 [shape = 's32[]', space=sflag, size = 0x4, offset = 0, fixed_abs, tag = 'sflag constant byte address 0x0 - dummy sync flag']
  #allocation6 [shape = 's32[]', space=sflag, size = 0x4, offset = 0, fixed_abs, tag = 'sflag constant byte address 0x0 - dummy sync flag']
  %s0 = inlined_call_operand.vmem [shape: f32[2,4,2816], index: 0, kind: input, shape index: {}]
  %s1 = inlined_call_operand.vmem [shape: bf16[4,36], index: 1, kind: input, shape index: {}]
  %s2 = inlined_call_operand.vmem [shape: f32[4,1], index: 2, kind: input, shape index: {}]
  %s3 = inlined_call_operand.vmem [shape: bf16[4,36], index: 3, kind: input, shape index: {}]
  %s4 = inlined_call_operand.vmem [shape: f32[4,1], index: 4, kind: input, shape index: {}]
  %s5 = inlined_call_operand.vmem [shape: f32[1,1280], index: 5, kind: input, shape index: {}]
  %s6 = inlined_call_operand.vmem [shape: f32[2,4,2048], index: 6, kind: output, shape index: {}]
  %s7 = sld [smem:[#allocation0]]
  $region137: #{residual_block_nobn.1} parent=0
    _
  %s9 = ssub.s32 1, %s7
  %s10 = scalar_select 0, %s9, %s7
  loop: start=0, step=1, limit=6
  $region2: #{residual_block_nobn.1} parent=0 // loop_pre_header
    _
  $region3: #{residual_block_nobn.1} parent=0 // loop_header
    %s12 = sphi 0, %s16
    %p13 = scmp.ge.s32.totalorder %s12, 6
    %s19 = sphi 0, %s31
    %s20 = sphi 0, %s27
    %s21 = sphi 0, %s19
    %s22 = sphi 0, %s20
    %s23 = sphi 0, %s21
    %s24 = sphi 0, %s22
    %s32 = sphi 0, %s32
    %s34 = sphi 0, %s32
    %s35 = sphi 0, %s34
    %s49 = sphi 0, %s35
    %s53 = sphi 0, %s53
    %s55 = sphi 0, %s53
    %s56 = sphi 0, %s55
    %s70 = sphi 0, %s56
    %s74 = sphi 0, %s74
    %s76 = sphi 0, %s74
    %s77 = sphi 0, %s76
    %s91 = sphi 0, %s77
    %s95 = sphi 0, %s95
    %s97 = sphi 0, %s95
    %s98 = sphi 0, %s97
    %s112 = sphi 0, %s98
    %s116 = sphi 0, %s116
    %s118 = sphi 0, %s116
    %s119 = sphi 0, %s118
    %s133 = sphi 0, %s119
    %s141 = sphi 0, %s143
    %s144 = sphi 0, %s141
    %s145 = sphi 0, %s144
    %s161 = sphi 0, %s145
  $region4: #{residual_block_nobn.1} parent=0 // loop_header_branch
    %15 = sbr.rel (%p13) target = $region8
  $region5: #{residual_block_nobn.1} parent=0 // loop_body
    %s17 = ssub.s32 %s12, 1
    %s18 = ssub.s32 %s12, 2
    %s25 = sadd.s32 1, %s20
    %p26 = scmp.ge.s32.totalorder %s25, 2
    %s27 = scalar_select %p26, 0, %s25
    %s28 = sadd.s32 1, %s19
    %s29 = scalar_select %p26, %s28, %s19
    %p30 = scmp.ge.s32.totalorder %s29, 2
    %s31 = scalar_select %p30, 0, %s29
    %s33 = sadd.s32 %s32, 1
    %p36 = scmp.eq.s32.totalorder %s12, 3
    %p37 = scmp.ne.s32.totalorder %s32, %s34
    %p38 = scmp.eq.s32.totalorder %s12, 0
    %p39 = por %p37, %p38
    %p40 = scmp.ne.s32.totalorder %s32, %s34
    %p41 = scmp.eq.s32.totalorder %s17, 3
    %p42 = por %p40, %p41
    %p43 = scmp.ne.s32.totalorder %s34, %s35
    %p44 = scmp.eq.s32.totalorder %s17, 0
    %p45 = por %p43, %p44
    %p46 = scmp.ne.s32.totalorder %s34, %s35
    %p47 = scmp.eq.s32.totalorder %s18, 3
    %p48 = por %p46, %p47
    %p50 = scmp.ne.s32.totalorder %s35, %s49
    %p51 = scmp.eq.s32.totalorder %s18, 0
    %p52 = por %p50, %p51
    %s54 = sadd.s32 %s53, 1
    %p57 = scmp.eq.s32.totalorder %s12, 3
    %p58 = scmp.ne.s32.totalorder %s53, %s55
    %p59 = scmp.eq.s32.totalorder %s12, 0
    %p60 = por %p58, %p59
    %p61 = scmp.ne.s32.totalorder %s53, %s55
    %p62 = scmp.eq.s32.totalorder %s17, 3
    %p63 = por %p61, %p62
    %p64 = scmp.ne.s32.totalorder %s55, %s56
    %p65 = scmp.eq.s32.totalorder %s17, 0
    %p66 = por %p64, %p65
    %p67 = scmp.ne.s32.totalorder %s55, %s56
    %p68 = scmp.eq.s32.totalorder %s18, 3
    %p69 = por %p67, %p68
    %p71 = scmp.ne.s32.totalorder %s56, %s70
    %p72 = scmp.eq.s32.totalorder %s18, 0
    %p73 = por %p71, %p72
    %s75 = sadd.s32 %s74, 1
    %p78 = scmp.eq.s32.totalorder %s12, 3
    %p79 = scmp.ne.s32.totalorder %s74, %s76
    %p80 = scmp.eq.s32.totalorder %s12, 0
    %p81 = por %p79, %p80
    %p82 = scmp.ne.s32.totalorder %s74, %s76
    %p83 = scmp.eq.s32.totalorder %s17, 3
    %p84 = por %p82, %p83
    %p85 = scmp.ne.s32.totalorder %s76, %s77
    %p86 = scmp.eq.s32.totalorder %s17, 0
    %p87 = por %p85, %p86
    %p88 = scmp.ne.s32.totalorder %s76, %s77
    %p89 = scmp.eq.s32.totalorder %s18, 3
    %p90 = por %p88, %p89
    %p92 = scmp.ne.s32.totalorder %s77, %s91
    %p93 = scmp.eq.s32.totalorder %s18, 0
    %p94 = por %p92, %p93
    %s96 = sadd.s32 %s95, 1
    %p99 = scmp.eq.s32.totalorder %s12, 3
    %p100 = scmp.ne.s32.totalorder %s95, %s97
    %p101 = scmp.eq.s32.totalorder %s12, 0
    %p102 = por %p100, %p101
    %p103 = scmp.ne.s32.totalorder %s95, %s97
    %p104 = scmp.eq.s32.totalorder %s17, 3
    %p105 = por %p103, %p104
    %p106 = scmp.ne.s32.totalorder %s97, %s98
    %p107 = scmp.eq.s32.totalorder %s17, 0
    %p108 = por %p106, %p107
    %p109 = scmp.ne.s32.totalorder %s97, %s98
    %p110 = scmp.eq.s32.totalorder %s18, 3
    %p111 = por %p109, %p110
    %p113 = scmp.ne.s32.totalorder %s98, %s112
    %p114 = scmp.eq.s32.totalorder %s18, 0
    %p115 = por %p113, %p114
    %s117 = sadd.s32 %s116, 1
    %p120 = scmp.eq.s32.totalorder %s12, 3
    %p121 = scmp.ne.s32.totalorder %s116, %s118
    %p122 = scmp.eq.s32.totalorder %s12, 0
    %p123 = por %p121, %p122
    %p124 = scmp.ne.s32.totalorder %s116, %s118
    %p125 = scmp.eq.s32.totalorder %s17, 3
    %p126 = por %p124, %p125
    %p127 = scmp.ne.s32.totalorder %s118, %s119
    %p128 = scmp.eq.s32.totalorder %s17, 0
    %p129 = por %p127, %p128
    %p130 = scmp.ne.s32.totalorder %s118, %s119
    %p131 = scmp.eq.s32.totalorder %s18, 3
    %p132 = por %p130, %p131
    %p134 = scmp.ne.s32.totalorder %s119, %s133
    %p135 = scmp.eq.s32.totalorder %s18, 0
    %p136 = por %p134, %p135
    %s137 = ssub.s32 %s19, %s31
    %s138 = ssub.s32 %s20, %s27
    %s139 = sor.u32 %s137, %s138
    %p140 = scmp.eq.s32.totalorder %s139, 0
    %s142 = sadd.s32 %s141, 1
    %s143 = scalar_select %p140, %s141, %s142
    %p146 = pneg %p140
    %p147 = scmp.eq.s32.totalorder %s12, 3
    %p148 = por %p146, %p147
    %p149 = scmp.ne.s32.totalorder %s141, %s144
    %p150 = scmp.eq.s32.totalorder %s12, 0
    %p151 = por %p149, %p150
    %p152 = scmp.ne.s32.totalorder %s141, %s144
    %p153 = scmp.eq.s32.totalorder %s17, 3
    %p154 = por %p152, %p153
    %p155 = scmp.ne.s32.totalorder %s144, %s145
    %p156 = scmp.eq.s32.totalorder %s17, 0
    %p157 = por %p155, %p156
    %p158 = scmp.ne.s32.totalorder %s144, %s145
    %p159 = scmp.eq.s32.totalorder %s18, 3
    %p160 = por %p158, %p159
    %p162 = scmp.ne.s32.totalorder %s145, %s161
    %p163 = scmp.eq.s32.totalorder %s18, 0
    %p164 = por %p162, %p163
    %p165 = scmp.le.s32.totalorder 1, %s12
    %p166 = scmp.lt.s32.totalorder %s12, 5
    %p167 = pnand %p165, %p166
    %p168 = pneg %p167
    // Predicated region
    $region9: #{residual_block_nobn.1} parent=5 // pred_check
      _
    $region10: #{residual_block_nobn.1} parent=5 // pred_check_branch
      %170 = sbr.rel (%p167) target = $region12
    $region11: #{residual_block_nobn.1} parent=5 // pred_region
      %s171 = ssub.s32 %s12, 1
      // Predicated region
      $region13: #{residual_block_nobn.1} parent=11 // pred_check
        %p172 = pneg %p45
      $region14: #{residual_block_nobn.1} parent=11 // pred_check_branch
        %174 = sbr.rel (%p172) target = $region16
      $region15: #{residual_block_nobn.1} parent=11 // pred_region
        _
      $region16: #{residual_block_nobn.1} parent=11 // pred_fallthru
        _
      // Predicated region
      $region17: #{residual_block_nobn.1} parent=11 // pred_check
        %p175 = pneg %p66
      $region18: #{residual_block_nobn.1} parent=11 // pred_check_branch
        %177 = sbr.rel (%p175) target = $region20
      $region19: #{residual_block_nobn.1} parent=11 // pred_region
        _
      $region20: #{residual_block_nobn.1} parent=11 // pred_fallthru
        _
      // Predicated region
      $region21: #{residual_block_nobn.1} parent=11 // pred_check
        %p178 = pneg %p87
      $region22: #{residual_block_nobn.1} parent=11 // pred_check_branch
        %180 = sbr.rel (%p178) target = $region24
      $region23: #{residual_block_nobn.1} parent=11 // pred_region
        _
      $region24: #{residual_block_nobn.1} parent=11 // pred_fallthru
        _
      // Predicated region
      $region25: #{residual_block_nobn.1} parent=11 // pred_check
        %p181 = pneg %p108
      $region26: #{residual_block_nobn.1} parent=11 // pred_check_branch
        %183 = sbr.rel (%p181) target = $region28
      $region27: #{residual_block_nobn.1} parent=11 // pred_region
        _
      $region28: #{residual_block_nobn.1} parent=11 // pred_fallthru
        _
      // Predicated region
      $region29: #{residual_block_nobn.1} parent=11 // pred_check
        %p184 = pneg %p129
      $region30: #{residual_block_nobn.1} parent=11 // pred_check_branch
        %186 = sbr.rel (%p184) target = $region32
      $region31: #{residual_block_nobn.1} parent=11 // pred_region
        _
      $region32: #{residual_block_nobn.1} parent=11 // pred_fallthru
        _
    $region12: #{residual_block_nobn.1} parent=5 // pred_fallthru
      _
    %p187 = scmp.lt.s32.totalorder %s12, 4
    // Predicated region
    $region33: #{residual_block_nobn.1} parent=5 // pred_check
      %p188 = pneg %p187
    $region34: #{residual_block_nobn.1} parent=5 // pred_check_branch
      %190 = sbr.rel (%p188) target = $region36
    $region35: #{residual_block_nobn.1} parent=5 // pred_region
      _
    $region36: #{residual_block_nobn.1} parent=5 // pred_fallthru
      _
    %p191 = scmp.le.s32.totalorder 1, %s12
    %p192 = scmp.lt.s32.totalorder %s12, 5
    %p193 = pnand %p191, %p192
    %p194 = pneg %p193
    // Predicated region
    $region37: #{residual_block_nobn.1} parent=5 // pred_check
      _
    $region38: #{residual_block_nobn.1} parent=5 // pred_check_branch
      %196 = sbr.rel (%p193) target = $region40
    $region39: #{residual_block_nobn.1} parent=5 // pred_region
      %s197 = ssub.s32 %s12, 1
      %p198 = pneg %p45
      %p199 = pneg %p42
      %p200 = pneg %p66
      %p201 = pneg %p63
      %p202 = pneg %p87
      %p203 = pneg %p84
      %p204 = pneg %p108
      %p205 = pneg %p105
      %p206 = pneg %p129
      %p207 = pneg %p126
      %p208 = pneg %p157
      %p209 = pneg %p154
      %s210 = smul.u32 8, %s22
      %p211 = scmp.lt.s32.totalorder %s21, 1
      %s212 = scalar_select %p211, %s21, 1
      %p213 = scmp.lt.s32.totalorder %s210, 15
      %s214 = scalar_select %p213, %s210, 15
      %s215 = smul.addr %s212, 16
      %s216 = sadd.s32 %s214, %s215
      %s217 = smul.addr %s216, 4
      %s218 = scalar_lea.vmem %s6, %s217
      %s219 = smul.u32 8, %s22
      %p220 = scmp.lt.s32.totalorder %s21, 1
      %s221 = scalar_select %p220, %s21, 1
      %p222 = scmp.lt.s32.totalorder %s219, 15
      %s223 = scalar_select %p222, %s219, 15
      %s224 = smul.addr %s221, 16
      %s225 = sadd.s32 %s223, %s224
      %s226 = smul.addr %s225, 4
      %s227 = scalar_lea.vmem %s6, %s226
      %s228 = smul.u32 8, %s22
      %p230 = scmp.lt.s32.totalorder %s22, 0
      %s231 = ssub.s32 0, %s22
      %s232 = scalar_select %p230, %s231, %s22
      %s233 = sand.u32 %s232, 1
      %s234 = ssub.s32 0, %s233
      %s235 = scalar_select %p230, %s234, %s233
      %p236 = scmp.ne.s32.totalorder %s235, 0
      %p237 = scmp.lt.s32.totalorder %s235, 0
      %p238 = pnand %p237, %p236
      %p239 = pneg %p238
      %s240 = sadd.s32 %s235, 2
      %s241 = scalar_select %p239, %s240, %s235
      %p242 = scmp.eq.s32.totalorder %s22, 0
      // Predicated region
      $region41: #{residual_block_nobn.1} parent=39 // pred_check
        %p243 = pneg %p242
      $region42: #{residual_block_nobn.1} parent=39 // pred_check_branch
        %245 = sbr.rel (%p243) target = $region44
      $region43: #{residual_block_nobn.1} parent=39 // pred_region
        %s246 = smul.u32 %s22, 1024
        %s247 = sshra.s32 %s246, 7
        %s248 = sand.u32 %s246, 127
        %s249 = smul.u32 %s21, 22
        %s250 = sadd.s32 %s247, %s249
        %s251 = smul.addr %s250, 4
        %s252 = scalar_lea.vmem %s0, %s251
        %s253 = smul.u32 %s241, 14
        %s254 = smul.addr %s253, 4
        %s255 = scalar_lea.vmem [#allocation2], %s254
        %s256 = scalar_lea.sflag [#allocation4], %s241
        %p258 = scmp.lt.u32.totalorder 56, 8
        %p259 = pneg %p258
        // Predicated region
        $region45: #{residual_block_nobn.1} parent=43 // pred_check
          _
        $region46: #{residual_block_nobn.1} parent=43 // pred_check_branch
          %261 = sbr.rel (%p258) target = $region48
        $region47: #{residual_block_nobn.1} parent=43 // pred_region
          %s277 = sand.u32 56, 7
          %p278 = scmp.eq.s32.totalorder %s277, 0
          // Predicated region
          $region60: #{residual_block_nobn.1} parent=47 // pred_check
            %p279 = pneg %p278
          $region61: #{residual_block_nobn.1} parent=47 // pred_check_branch
            %281 = sbr.rel (%p279) target = $region63
          $region62: #{residual_block_nobn.1} parent=47 // pred_region
            loop: start=0, step=1, limit=1
            $region64: #{residual_block_nobn.1} parent=62 // loop_pre_header
              _
            $region65: #{residual_block_nobn.1} parent=62 // loop_header
              %s283 = sphi 0, %s287
              %p284 = scmp.ge.s32.totalorder %s283, 1
              %s288 = sphi %s252, %s252
              %s289 = sphi %s255, %s255
            $region66: #{residual_block_nobn.1} parent=62 // loop_header_branch
              %286 = sbr.rel (%p284) target = $region70
            $region67: #{residual_block_nobn.1} parent=62 // loop_body
              %v290 = vld [vmem:[%s288] sm:$0xff]
              %291 = vst [vmem:[%s289] sm:$0xff] %v290
              %v292 = vld [vmem:[%s288 + $0x8] sm:$0xff]
              %293 = vst [vmem:[%s289 + $0x8] sm:$0xff] %v292
              %v294 = vld [vmem:[%s288 + $0x10] sm:$0xff]
              %295 = vst [vmem:[%s289 + $0x10] sm:$0xff] %v294
              %v296 = vld [vmem:[%s288 + $0x18] sm:$0xff]
              %297 = vst [vmem:[%s289 + $0x18] sm:$0xff] %v296
              %v298 = vld [vmem:[%s288 + $0x20] sm:$0xff]
              %299 = vst [vmem:[%s289 + $0x20] sm:$0xff] %v298
              %v300 = vld [vmem:[%s288 + $0x28] sm:$0xff]
              %301 = vst [vmem:[%s289 + $0x28] sm:$0xff] %v300
              %v302 = vld [vmem:[%s288 + $0x30] sm:$0xff]
              %303 = vst [vmem:[%s289 + $0x30] sm:$0xff] %v302
            $region68: #{residual_block_nobn.1} parent=62 // loop_footer
              %s287 = sadd.s32 1, %s283
            $region69: #{residual_block_nobn.1} parent=62 // loop_footer_branch
              %282 = sbr.rel target = $region65
            $region70: #{residual_block_nobn.1} parent=62 // loop_exit
              _
          $region63: #{residual_block_nobn.1} parent=47 // pred_fallthru
            _
          %p304 = pneg %p278
          // Predicated region
          $region71: #{residual_block_nobn.1} parent=47 // pred_check
            _
          $region72: #{residual_block_nobn.1} parent=47 // pred_check_branch
            %306 = sbr.rel (%p278) target = $region74
          $region73: #{residual_block_nobn.1} parent=47 // pred_region
            %s307 = sand.u32 56, 7
          $region74: #{residual_block_nobn.1} parent=47 // pred_fallthru
            _
        $region48: #{residual_block_nobn.1} parent=43 // pred_fallthru
          _
        // Predicated region
        $region49: #{residual_block_nobn.1} parent=43 // pred_check
          %p262 = pneg %p258
        $region50: #{residual_block_nobn.1} parent=43 // pred_check_branch
          %264 = sbr.rel (%p262) target = $region52
        $region51: #{residual_block_nobn.1} parent=43 // pred_region
          %s265 = sshll.u32 1, 56
          %s266 = ssub.s32 %s265, 1
          loop: start=0, step=1, limit=1
          $region53: #{residual_block_nobn.1} parent=51 // loop_pre_header
            _
          $region54: #{residual_block_nobn.1} parent=51 // loop_header
            %s268 = sphi 0, %s272
            %p269 = scmp.ge.s32.totalorder %s268, 1
            %s273 = sphi %s252, %s252
            %s274 = sphi %s255, %s255
          $region55: #{residual_block_nobn.1} parent=51 // loop_header_branch
            %271 = sbr.rel (%p269) target = $region59
          $region56: #{residual_block_nobn.1} parent=51 // loop_body
            %v275 = vld [vmem:[%s273] sm:%s266]
            %276 = vst [vmem:[%s274] sm:%s266] %v275
          $region57: #{residual_block_nobn.1} parent=51 // loop_footer
            %s272 = sadd.s32 1, %s268
          $region58: #{residual_block_nobn.1} parent=51 // loop_footer_branch
            %267 = sbr.rel target = $region54
          $region59: #{residual_block_nobn.1} parent=51 // loop_exit
            _
        $region52: #{residual_block_nobn.1} parent=43 // pred_fallthru
          _
        // Predicated region
        $region75: #{residual_block_nobn.1} parent=43 // pred_check
          _
        $region76: #{residual_block_nobn.1} parent=43 // pred_check_branch
          %310 = sbr.rel (0) target = $region78
        $region77: #{residual_block_nobn.1} parent=43 // pred_region
          %311 = vsyncadd %s256, 896
        $region78: #{residual_block_nobn.1} parent=43 // pred_fallthru
          _
      $region44: #{residual_block_nobn.1} parent=39 // pred_fallthru
        _
      %s312 = sadd.s32 %s22, 1
      %p313 = scmp.lt.s32.totalorder %s312, 2
      // Predicated region
      $region79: #{residual_block_nobn.1} parent=39 // pred_check
        %p314 = pneg %p313
      $region80: #{residual_block_nobn.1} parent=39 // pred_check_branch
        %316 = sbr.rel (%p314) target = $region82
      $region81: #{residual_block_nobn.1} parent=39 // pred_region
        %p317 = scmp.lt.s32.totalorder %s312, 0
        %s318 = ssub.s32 0, %s312
        %s319 = scalar_select %p317, %s318, %s312
        %s320 = sand.u32 %s319, 1
        %s321 = ssub.s32 0, %s320
        %s322 = scalar_select %p317, %s321, %s320
        %p323 = scmp.ne.s32.totalorder %s322, 0
        %p324 = scmp.lt.s32.totalorder %s322, 0
        %p325 = pnand %p324, %p323
        %p326 = pneg %p325
        %s327 = sadd.s32 %s322, 2
        %s328 = scalar_select %p326, %s327, %s322
        %s329 = smul.u32 %s312, 1024
        %s330 = sshra.s32 %s329, 7
        %s331 = sand.u32 %s329, 127
        %s332 = smul.u32 %s21, 22
        %s333 = sadd.s32 %s330, %s332
        %s334 = smul.addr %s333, 4
        %s335 = scalar_lea.vmem %s0, %s334
        %s336 = smul.u32 %s328, 14
        %s337 = smul.addr %s336, 4
        %s338 = scalar_lea.vmem [#allocation2], %s337
        %s339 = scalar_lea.sflag [#allocation4], %s328
        %p341 = scmp.lt.u32.totalorder 56, 8
        %p342 = pneg %p341
        // Predicated region
        $region83: #{residual_block_nobn.1} parent=81 // pred_check
          _
        $region84: #{residual_block_nobn.1} parent=81 // pred_check_branch
          %344 = sbr.rel (%p341) target = $region86
        $region85: #{residual_block_nobn.1} parent=81 // pred_region
          %s360 = sand.u32 56, 7
          %p361 = scmp.eq.s32.totalorder %s360, 0
          // Predicated region
          $region98: #{residual_block_nobn.1} parent=85 // pred_check
            %p362 = pneg %p361
          $region99: #{residual_block_nobn.1} parent=85 // pred_check_branch
            %364 = sbr.rel (%p362) target = $region101
          $region100: #{residual_block_nobn.1} parent=85 // pred_region
            loop: start=0, step=1, limit=1
            $region102: #{residual_block_nobn.1} parent=100 // loop_pre_header
              _
            $region103: #{residual_block_nobn.1} parent=100 // loop_header
              %s366 = sphi 0, %s370
              %p367 = scmp.ge.s32.totalorder %s366, 1
              %s371 = sphi %s335, %s335
              %s372 = sphi %s338, %s338
            $region104: #{residual_block_nobn.1} parent=100 // loop_header_branch
              %369 = sbr.rel (%p367) target = $region108
            $region105: #{residual_block_nobn.1} parent=100 // loop_body
              %v373 = vld [vmem:[%s371] sm:$0xff]
              %374 = vst [vmem:[%s372] sm:$0xff] %v373
              %v375 = vld [vmem:[%s371 + $0x8] sm:$0xff]
              %376 = vst [vmem:[%s372 + $0x8] sm:$0xff] %v375
              %v377 = vld [vmem:[%s371 + $0x10] sm:$0xff]
              %378 = vst [vmem:[%s372 + $0x10] sm:$0xff] %v377
              %v379 = vld [vmem:[%s371 + $0x18] sm:$0xff]
              %380 = vst [vmem:[%s372 + $0x18] sm:$0xff] %v379
              %v381 = vld [vmem:[%s371 + $0x20] sm:$0xff]
              %382 = vst [vmem:[%s372 + $0x20] sm:$0xff] %v381
              %v383 = vld [vmem:[%s371 + $0x28] sm:$0xff]
              %384 = vst [vmem:[%s372 + $0x28] sm:$0xff] %v383
              %v385 = vld [vmem:[%s371 + $0x30] sm:$0xff]
              %386 = vst [vmem:[%s372 + $0x30] sm:$0xff] %v385
            $region106: #{residual_block_nobn.1} parent=100 // loop_footer
              %s370 = sadd.s32 1, %s366
            $region107: #{residual_block_nobn.1} parent=100 // loop_footer_branch
              %365 = sbr.rel target = $region103
            $region108: #{residual_block_nobn.1} parent=100 // loop_exit
              _
          $region101: #{residual_block_nobn.1} parent=85 // pred_fallthru
            _
          %p387 = pneg %p361
          // Predicated region
          $region109: #{residual_block_nobn.1} parent=85 // pred_check
            _
          $region110: #{residual_block_nobn.1} parent=85 // pred_check_branch
            %389 = sbr.rel (%p361) target = $region112
          $region111: #{residual_block_nobn.1} parent=85 // pred_region
            %s390 = sand.u32 56, 7
          $region112: #{residual_block_nobn.1} parent=85 // pred_fallthru
            _
        $region86: #{residual_block_nobn.1} parent=81 // pred_fallthru
          _
        // Predicated region
        $region87: #{residual_block_nobn.1} parent=81 // pred_check
          %p345 = pneg %p341
        $region88: #{residual_block_nobn.1} parent=81 // pred_check_branch
          %347 = sbr.rel (%p345) target = $region90
        $region89: #{residual_block_nobn.1} parent=81 // pred_region
          %s348 = sshll.u32 1, 56
          %s349 = ssub.s32 %s348, 1
          loop: start=0, step=1, limit=1
          $region91: #{residual_block_nobn.1} parent=89 // loop_pre_header
            _
          $region92: #{residual_block_nobn.1} parent=89 // loop_header
            %s351 = sphi 0, %s355
            %p352 = scmp.ge.s32.totalorder %s351, 1
            %s356 = sphi %s335, %s335
            %s357 = sphi %s338, %s338
          $region93: #{residual_block_nobn.1} parent=89 // loop_header_branch
            %354 = sbr.rel (%p352) target = $region97
          $region94: #{residual_block_nobn.1} parent=89 // loop_body
            %v358 = vld [vmem:[%s356] sm:%s349]
            %359 = vst [vmem:[%s357] sm:%s349] %v358
          $region95: #{residual_block_nobn.1} parent=89 // loop_footer
            %s355 = sadd.s32 1, %s351
          $region96: #{residual_block_nobn.1} parent=89 // loop_footer_branch
            %350 = sbr.rel target = $region92
          $region97: #{residual_block_nobn.1} parent=89 // loop_exit
            _
        $region90: #{residual_block_nobn.1} parent=81 // pred_fallthru
          _
        // Predicated region
        $region113: #{residual_block_nobn.1} parent=81 // pred_check
          _
        $region114: #{residual_block_nobn.1} parent=81 // pred_check_branch
          %393 = sbr.rel (0) target = $region116
        $region115: #{residual_block_nobn.1} parent=81 // pred_region
          %394 = vsyncadd %s339, 896
        $region116: #{residual_block_nobn.1} parent=81 // pred_fallthru
          _
      $region82: #{residual_block_nobn.1} parent=39 // pred_fallthru
        _
      %s395 = smul.u32 %s22, 1024
      %s396 = smul.u32 %s241, 14
      %s397 = smul.addr %s396, 4
      %s398 = scalar_lea.vmem [#allocation2], %s397
      %s399 = scalar_lea.sflag [#allocation4], %s241
      %s400 = smul.u32 4, 1
      %s401 = smul.u32 %s400, 14
      %s402 = sshll.u32 %s401, 4
      %403 = dma.done %s399, %s402
      %v404 = vld [vmem:[%s398] sm:$0xff]
      %v405 = vld [vmem:[%s398 + $0x8] sm:$0xff]
      %v406 = vld [vmem:[%s398 + $0x10] sm:$0xff]
      %v407 = vld [vmem:[%s398 + $0x18] sm:$0xff]
      %v408 = vld [vmem:[%s398 + $0x20] sm:$0xff]
      %v409 = vld [vmem:[%s398 + $0x28] sm:$0xff]
      %v410 = vld [vmem:[%s398 + $0x30] sm:$0xff]
      %v418 = vcombine.high %v404, %v404
      %v419 = vcombine.high %v405, %v405
      %v420 = vcombine.high %v406, %v406
      %v421 = vcombine.high %v407, %v407
      %v422 = vcombine.high %v408, %v408
      %v423 = vcombine.high %v409, %v409
      %v424 = vcombine.high %v410, %v410
      %v432 = vpack.c.bf16 %v404, %v404
      %v433 = vpack.c.bf16 %v418, %v418
      %v434 = vpack.c.bf16 %v405, %v405
      %v435 = vpack.c.bf16 %v419, %v419
      %v436 = vpack.c.bf16 %v406, %v406
      %v437 = vpack.c.bf16 %v420, %v420
      %v438 = vpack.c.bf16 %v407, %v407
      %v439 = vpack.c.bf16 %v421, %v421
      %v440 = vpack.c.bf16 %v408, %v408
      %v441 = vpack.c.bf16 %v422, %v422
      %v442 = vpack.c.bf16 %v409, %v409
      %v443 = vpack.c.bf16 %v423, %v423
      %v444 = vpack.c.bf16 %v410, %v410
      %v445 = vpack.c.bf16 %v424, %v424
      %v446 = vld [vmem:[%s1] sm:$0x3]
      %v457 = vrot.slane %v433, 6
      %v458 = vrot.slane %v434, 6
      %v459 = vrot.slane %v435, 6
      %v460 = vrot.slane %v436, 6
      %v461 = vrot.slane %v437, 6
      %v462 = vrot.slane %v438, 6
      %v463 = vrot.slane %v439, 6
      %v464 = vrot.slane %v440, 6
      %v465 = vrot.slane %v441, 6
      %v466 = vrot.slane %v442, 6
      %467 = vrot.lane.b32.xlu0 %v457, 127
      %v468 = vpop.permute.xlu0 %467
      %469 = vrot.lane.b32.xlu0 %v458, 127
      %v470 = vpop.permute.xlu0 %469
      %471 = vrot.lane.b32.xlu0 %v459, 127
      %v472 = vpop.permute.xlu0 %471
      %473 = vrot.lane.b32.xlu0 %v460, 127
      %v474 = vpop.permute.xlu0 %473
      %475 = vrot.lane.b32.xlu0 %v461, 127
      %v476 = vpop.permute.xlu0 %475
      %477 = vrot.lane.b32.xlu0 %v462, 127
      %v478 = vpop.permute.xlu0 %477
      %479 = vrot.lane.b32.xlu0 %v463, 127
      %v480 = vpop.permute.xlu0 %479
      %481 = vrot.lane.b32.xlu0 %v464, 127
      %v482 = vpop.permute.xlu0 %481
      %483 = vrot.lane.b32.xlu0 %v465, 127
      %v484 = vpop.permute.xlu0 %483
      %485 = vrot.lane.b32.xlu0 %v466, 127
      %v486 = vpop.permute.xlu0 %485
      %vm487 = vcmask 1039360
      %v488 = vsel %vm487, %v468, %v470
      %v489 = vsel %vm487, %v470, %v472
      %v490 = vsel %vm487, %v472, %v474
      %v491 = vsel %vm487, %v474, %v476
      %v492 = vsel %vm487, %v476, %v478
      %v493 = vsel %vm487, %v478, %v480
      %v494 = vsel %vm487, %v480, %v482
      %v495 = vsel %vm487, %v482, %v484
      %v496 = vsel %vm487, %v484, %v486
      %v498 = vrot.slane %v433, 4
      %v499 = vrot.slane %v434, 4
      %v500 = vrot.slane %v435, 4
      %v501 = vrot.slane %v436, 4
      %v502 = vrot.slane %v437, 4
      %v503 = vrot.slane %v438, 4
      %v504 = vrot.slane %v439, 4
      %v505 = vrot.slane %v440, 4
      %v506 = vrot.slane %v441, 4
      %v507 = vrot.slane %v442, 4
      %v508 = vrot.slane %v443, 4
      %509 = vrot.lane.b32.xlu0 %v498, 126
      %v510 = vpop.permute.xlu0 %509
      %511 = vrot.lane.b32.xlu0 %v499, 126
      %v512 = vpop.permute.xlu0 %511
      %513 = vrot.lane.b32.xlu0 %v500, 126
      %v514 = vpop.permute.xlu0 %513
      %515 = vrot.lane.b32.xlu0 %v501, 126
      %v516 = vpop.permute.xlu0 %515
      %517 = vrot.lane.b32.xlu0 %v502, 126
      %v518 = vpop.permute.xlu0 %517
      %519 = vrot.lane.b32.xlu0 %v503, 126
      %v520 = vpop.permute.xlu0 %519
      %521 = vrot.lane.b32.xlu0 %v504, 126
      %v522 = vpop.permute.xlu0 %521
      %523 = vrot.lane.b32.xlu0 %v505, 126
      %v524 = vpop.permute.xlu0 %523
      %525 = vrot.lane.b32.xlu0 %v506, 126
      %v526 = vpop.permute.xlu0 %525
      %527 = vrot.lane.b32.xlu0 %v507, 126
      %v528 = vpop.permute.xlu0 %527
      %529 = vrot.lane.b32.xlu0 %v508, 126
      %v530 = vpop.permute.xlu0 %529
      %vm531 = vcmask 1031168
      %v532 = vsel %vm531, %v510, %v512
      %v533 = vsel %vm531, %v512, %v514
      %v534 = vsel %vm531, %v514, %v516
      %v535 = vsel %vm531, %v516, %v518
      %v536 = vsel %vm531, %v518, %v520
      %v537 = vsel %vm531, %v520, %v522
      %v538 = vsel %vm531, %v522, %v524
      %v539 = vsel %vm531, %v524, %v526
      %v540 = vsel %vm531, %v526, %v528
      %v541 = vsel %vm531, %v528, %v530
      %v542 = vrot.slane %v433, 2
      %v543 = vrot.slane %v434, 2
      %v544 = vrot.slane %v435, 2
      %v545 = vrot.slane %v436, 2
      %v546 = vrot.slane %v437, 2
      %v547 = vrot.slane %v438, 2
      %v548 = vrot.slane %v439, 2
      %v549 = vrot.slane %v440, 2
      %v550 = vrot.slane %v441, 2
      %v551 = vrot.slane %v442, 2
      %v552 = vrot.slane %v443, 2
      %553 = vrot.lane.b32.xlu0 %v434, 127
      %v554 = vpop.permute.xlu0 %553
      %555 = vrot.lane.b32.xlu0 %v435, 127
      %v556 = vpop.permute.xlu0 %555
      %557 = vrot.lane.b32.xlu0 %v436, 127
      %v558 = vpop.permute.xlu0 %557
      %559 = vrot.lane.b32.xlu0 %v437, 127
      %v560 = vpop.permute.xlu0 %559
      %561 = vrot.lane.b32.xlu0 %v438, 127
      %v562 = vpop.permute.xlu0 %561
      %563 = vrot.lane.b32.xlu0 %v439, 127
      %v564 = vpop.permute.xlu0 %563
      %565 = vrot.lane.b32.xlu0 %v440, 127
      %v566 = vpop.permute.xlu0 %565
      %567 = vrot.lane.b32.xlu0 %v441, 127
      %v568 = vpop.permute.xlu0 %567
      %569 = vrot.lane.b32.xlu0 %v442, 127
      %v570 = vpop.permute.xlu0 %569
      %571 = vrot.lane.b32.xlu0 %v443, 127
      %v572 = vpop.permute.xlu0 %571
      %v573 = vsel %vm487, %v554, %v556
      %v574 = vsel %vm487, %v556, %v558
      %v575 = vsel %vm487, %v558, %v560
      %v576 = vsel %vm487, %v560, %v562
      %v577 = vsel %vm487, %v562, %v564
      %v578 = vsel %vm487, %v564, %v566
      %v579 = vsel %vm487, %v566, %v568
      %v580 = vsel %vm487, %v568, %v570
      %v581 = vsel %vm487, %v570, %v572
      %v583 = vrot.slane %v443, 6
      %v584 = vrot.slane %v444, 6
      %585 = vrot.lane.b32.xlu0 %v458, 126
      %v586 = vpop.permute.xlu0 %585
      %587 = vrot.lane.b32.xlu0 %v459, 126
      %v588 = vpop.permute.xlu0 %587
      %589 = vrot.lane.b32.xlu0 %v460, 126
      %v590 = vpop.permute.xlu0 %589
      %591 = vrot.lane.b32.xlu0 %v461, 126
      %v592 = vpop.permute.xlu0 %591
      %593 = vrot.lane.b32.xlu0 %v462, 126
      %v594 = vpop.permute.xlu0 %593
      %595 = vrot.lane.b32.xlu0 %v463, 126
      %v596 = vpop.permute.xlu0 %595
      %597 = vrot.lane.b32.xlu0 %v464, 126
      %v598 = vpop.permute.xlu0 %597
      %599 = vrot.lane.b32.xlu0 %v465, 126
      %v600 = vpop.permute.xlu0 %599
      %601 = vrot.lane.b32.xlu0 %v466, 126
      %v602 = vpop.permute.xlu0 %601
      %603 = vrot.lane.b32.xlu0 %v583, 126
      %v604 = vpop.permute.xlu0 %603
      %605 = vrot.lane.b32.xlu0 %v584, 126
      %v606 = vpop.permute.xlu0 %605
      %v607 = vsel %vm531, %v586, %v588
      %v608 = vsel %vm531, %v588, %v590
      %v609 = vsel %vm531, %v590, %v592
      %v610 = vsel %vm531, %v592, %v594
      %v611 = vsel %vm531, %v594, %v596
      %v612 = vsel %vm531, %v596, %v598
      %v613 = vsel %vm531, %v598, %v600
      %v614 = vsel %vm531, %v600, %v602
      %v615 = vsel %vm531, %v602, %v604
      %v616 = vsel %vm531, %v604, %v606
      %v617 = vrot.slane %v444, 4
      %v618 = vrot.slane %v444, 2
      %619 = vrot.lane.b32.xlu0 %v544, 127
      %v620 = vpop.permute.xlu0 %619
      %621 = vrot.lane.b32.xlu0 %v545, 127
      %v622 = vpop.permute.xlu0 %621
      %623 = vrot.lane.b32.xlu0 %v546, 127
      %v624 = vpop.permute.xlu0 %623
      %625 = vrot.lane.b32.xlu0 %v547, 127
      %v626 = vpop.permute.xlu0 %625
      %627 = vrot.lane.b32.xlu0 %v548, 127
      %v628 = vpop.permute.xlu0 %627
      %629 = vrot.lane.b32.xlu0 %v549, 127
      %v630 = vpop.permute.xlu0 %629
      %631 = vrot.lane.b32.xlu0 %v550, 127
      %v632 = vpop.permute.xlu0 %631
      %633 = vrot.lane.b32.xlu0 %v551, 127
      %v634 = vpop.permute.xlu0 %633
      %635 = vrot.lane.b32.xlu0 %v552, 127
      %v636 = vpop.permute.xlu0 %635
      %637 = vrot.lane.b32.xlu0 %v618, 127
      %v638 = vpop.permute.xlu0 %637
      %v639 = vsel %vm487, %v620, %v622
      %v640 = vsel %vm487, %v622, %v624
      %v641 = vsel %vm487, %v624, %v626
      %v642 = vsel %vm487, %v626, %v628
      %v643 = vsel %vm487, %v628, %v630
      %v644 = vsel %vm487, %v630, %v632
      %v645 = vsel %vm487, %v632, %v634
      %v646 = vsel %vm487, %v634, %v636
      %v647 = vsel %vm487, %v636, %v638
      %649 = vrot.lane.b32.xlu0 %v435, 126
      %v650 = vpop.permute.xlu0 %649
      %651 = vrot.lane.b32.xlu0 %v436, 126
      %v652 = vpop.permute.xlu0 %651
      %653 = vrot.lane.b32.xlu0 %v437, 126
      %v654 = vpop.permute.xlu0 %653
      %655 = vrot.lane.b32.xlu0 %v438, 126
      %v656 = vpop.permute.xlu0 %655
      %657 = vrot.lane.b32.xlu0 %v439, 126
      %v658 = vpop.permute.xlu0 %657
      %659 = vrot.lane.b32.xlu0 %v440, 126
      %v660 = vpop.permute.xlu0 %659
      %661 = vrot.lane.b32.xlu0 %v441, 126
      %v662 = vpop.permute.xlu0 %661
      %663 = vrot.lane.b32.xlu0 %v442, 126
      %v664 = vpop.permute.xlu0 %663
      %665 = vrot.lane.b32.xlu0 %v443, 126
      %v666 = vpop.permute.xlu0 %665
      %667 = vrot.lane.b32.xlu0 %v444, 126
      %v668 = vpop.permute.xlu0 %667
      %669 = vrot.lane.b32.xlu0 %v445, 126
      %v670 = vpop.permute.xlu0 %669
      %v671 = vsel %vm531, %v650, %v652
      %v672 = vsel %vm531, %v652, %v654
      %v673 = vsel %vm531, %v654, %v656
      %v674 = vsel %vm531, %v656, %v658
      %v675 = vsel %vm531, %v658, %v660
      %v676 = vsel %vm531, %v660, %v662
      %v677 = vsel %vm531, %v662, %v664
      %v678 = vsel %vm531, %v664, %v666
      %v679 = vsel %vm531, %v666, %v668
      %v680 = vsel %vm531, %v668, %v670
      %vm681 = vcmask 1041408
      %v684 = vsel %vm681, %v432, %v468
      %v687 = vsel %vm681, %v433, %v488
      %v690 = vsel %vm681, %v434, %v489
      %v693 = vsel %vm681, %v435, %v490
      %v696 = vsel %vm681, %v436, %v491
      %v699 = vsel %vm681, %v437, %v492
      %v702 = vsel %vm681, %v438, %v493
      %v705 = vsel %vm681, %v439, %v494
      %v708 = vsel %vm681, %v440, %v495
      %v711 = vsel %vm681, %v441, %v496
      %v714 = vsel %vm681, %v442, %v486
      %vm715 = vcmask 1043456
      %v717 = vsel %vm715, %v684, %v510
      %v719 = vsel %vm715, %v687, %v532
      %v721 = vsel %vm715, %v690, %v533
      %v723 = vsel %vm715, %v693, %v534
      %v725 = vsel %vm715, %v696, %v535
      %v727 = vsel %vm715, %v699, %v536
      %v729 = vsel %vm715, %v702, %v537
      %v731 = vsel %vm715, %v705, %v538
      %v733 = vsel %vm715, %v708, %v539
      %v735 = vsel %vm715, %v711, %v540
      %v737 = vsel %vm715, %v714, %v541
      %vm738 = vcmask 1045504
      %v740 = vsel %vm738, %v717, %v542
      %v742 = vsel %vm738, %v719, %v543
      %v744 = vsel %vm738, %v721, %v544
      %v746 = vsel %vm738, %v723, %v545
      %v748 = vsel %vm738, %v725, %v546
      %v750 = vsel %vm738, %v727, %v547
      %v752 = vsel %vm738, %v729, %v548
      %v754 = vsel %vm738, %v731, %v549
      %v756 = vsel %vm738, %v733, %v550
      %v758 = vsel %vm738, %v735, %v551
      %v760 = vsel %vm738, %v737, %v552
      %v763 = vsel %vm681, %v554, %v586
      %v766 = vsel %vm681, %v573, %v607
      %v769 = vsel %vm681, %v574, %v608
      %v772 = vsel %vm681, %v575, %v609
      %v775 = vsel %vm681, %v576, %v610
      %v778 = vsel %vm681, %v577, %v611
      %v781 = vsel %vm681, %v578, %v612
      %v784 = vsel %vm681, %v579, %v613
      %v787 = vsel %vm681, %v580, %v614
      %v790 = vsel %vm681, %v581, %v615
      %v793 = vsel %vm681, %v572, %v616
      %v795 = vsel %vm715, %v763, %v499
      %v797 = vsel %vm715, %v766, %v500
      %v799 = vsel %vm715, %v769, %v501
      %v801 = vsel %vm715, %v772, %v502
      %v803 = vsel %vm715, %v775, %v503
      %v805 = vsel %vm715, %v778, %v504
      %v807 = vsel %vm715, %v781, %v505
      %v809 = vsel %vm715, %v784, %v506
      %v811 = vsel %vm715, %v787, %v507
      %v813 = vsel %vm715, %v790, %v508
      %v815 = vsel %vm715, %v793, %v617
      %v817 = vsel %vm738, %v795, %v620
      %v819 = vsel %vm738, %v797, %v639
      %v821 = vsel %vm738, %v799, %v640
      %v823 = vsel %vm738, %v801, %v641
      %v825 = vsel %vm738, %v803, %v642
      %v827 = vsel %vm738, %v805, %v643
      %v829 = vsel %vm738, %v807, %v644
      %v831 = vsel %vm738, %v809, %v645
      %v833 = vsel %vm738, %v811, %v646
      %v835 = vsel %vm738, %v813, %v647
      %v837 = vsel %vm738, %v815, %v638
      %v838 = vld [vmem:[%s2] sm:$0xf]
      %840 = vset.pattern.permute.xlu0 0
      %841 = vperm.xlu0 %840, %v838
      %v842 = vpop.permute.xlu0 %841
      %866 = vrot.lane.b32.xlu0 %v740, 1
      %v867 = vpop.permute.xlu0 %866
      %868 = vrot.lane.b32.xlu0 %v742, 1
      %v869 = vpop.permute.xlu0 %868
      %870 = vrot.lane.b32.xlu0 %v744, 1
      %v871 = vpop.permute.xlu0 %870
      %872 = vrot.lane.b32.xlu0 %v746, 1
      %v873 = vpop.permute.xlu0 %872
      %874 = vrot.lane.b32.xlu0 %v748, 1
      %v875 = vpop.permute.xlu0 %874
      %876 = vrot.lane.b32.xlu0 %v750, 1
      %v877 = vpop.permute.xlu0 %876
      %878 = vrot.lane.b32.xlu0 %v752, 1
      %v879 = vpop.permute.xlu0 %878
      %880 = vrot.lane.b32.xlu0 %v754, 1
      %v881 = vpop.permute.xlu0 %880
      %882 = vrot.lane.b32.xlu0 %v756, 1
      %v883 = vpop.permute.xlu0 %882
      %884 = vrot.lane.b32.xlu0 %v758, 1
      %v885 = vpop.permute.xlu0 %884
      %886 = vrot.lane.b32.xlu0 %v760, 1
      %v887 = vpop.permute.xlu0 %886
      %888 = vrot.lane.b32.xlu0 %v817, 1
      %v889 = vpop.permute.xlu0 %888
      %890 = vrot.lane.b32.xlu0 %v819, 1
      %v891 = vpop.permute.xlu0 %890
      %892 = vrot.lane.b32.xlu0 %v821, 1
      %v893 = vpop.permute.xlu0 %892
      %894 = vrot.lane.b32.xlu0 %v823, 1
      %v895 = vpop.permute.xlu0 %894
      %896 = vrot.lane.b32.xlu0 %v825, 1
      %v897 = vpop.permute.xlu0 %896
      %898 = vrot.lane.b32.xlu0 %v827, 1
      %v899 = vpop.permute.xlu0 %898
      %900 = vrot.lane.b32.xlu0 %v829, 1
      %v901 = vpop.permute.xlu0 %900
      %902 = vrot.lane.b32.xlu0 %v831, 1
      %v903 = vpop.permute.xlu0 %902
      %904 = vrot.lane.b32.xlu0 %v833, 1
      %v905 = vpop.permute.xlu0 %904
      %906 = vrot.lane.b32.xlu0 %v835, 1
      %v907 = vpop.permute.xlu0 %906
      %908 = vrot.lane.b32.xlu0 %v837, 1
      %v909 = vpop.permute.xlu0 %908
      %910 = vrot.lane.b32.xlu0 %v650, 1
      %v911 = vpop.permute.xlu0 %910
      %912 = vrot.lane.b32.xlu0 %v671, 1
      %v913 = vpop.permute.xlu0 %912
      %914 = vrot.lane.b32.xlu0 %v672, 1
      %v915 = vpop.permute.xlu0 %914
      %916 = vrot.lane.b32.xlu0 %v673, 1
      %v917 = vpop.permute.xlu0 %916
      %918 = vrot.lane.b32.xlu0 %v674, 1
      %v919 = vpop.permute.xlu0 %918
      %920 = vrot.lane.b32.xlu0 %v675, 1
      %v921 = vpop.permute.xlu0 %920
      %922 = vrot.lane.b32.xlu0 %v676, 1
      %v923 = vpop.permute.xlu0 %922
      %924 = vrot.lane.b32.xlu0 %v677, 1
      %v925 = vpop.permute.xlu0 %924
      %926 = vrot.lane.b32.xlu0 %v678, 1
      %v927 = vpop.permute.xlu0 %926
      %928 = vrot.lane.b32.xlu0 %v679, 1
      %v929 = vpop.permute.xlu0 %928
      %930 = vrot.lane.b32.xlu0 %v680, 1
      %v931 = vpop.permute.xlu0 %930
      %vm932 = vcmask 7168
      %v933 = vsel %vm932, %v867, %v869
      %v934 = vsel %vm932, %v869, %v871
      %v935 = vsel %vm932, %v871, %v873
      %v936 = vsel %vm932, %v873, %v875
      %v937 = vsel %vm932, %v875, %v877
      %v938 = vsel %vm932, %v877, %v879
      %v939 = vsel %vm932, %v879, %v881
      %v940 = vsel %vm932, %v881, %v883
      %v941 = vsel %vm932, %v883, %v885
      %v942 = vsel %vm932, %v885, %v887
      %v943 = vsel %vm932, %v889, %v891
      %v944 = vsel %vm932, %v891, %v893
      %v945 = vsel %vm932, %v893, %v895
      %v946 = vsel %vm932, %v895, %v897
      %v947 = vsel %vm932, %v897, %v899
      %v948 = vsel %vm932, %v899, %v901
      %v949 = vsel %vm932, %v901, %v903
      %v950 = vsel %vm932, %v903, %v905
      %v951 = vsel %vm932, %v905, %v907
      %v952 = vsel %vm932, %v907, %v909
      %v953 = vsel %vm932, %v911, %v913
      %v954 = vsel %vm932, %v913, %v915
      %v955 = vsel %vm932, %v915, %v917
      %v956 = vsel %vm932, %v917, %v919
      %v957 = vsel %vm932, %v919, %v921
      %v958 = vsel %vm932, %v921, %v923
      %v959 = vsel %vm932, %v923, %v925
      %v960 = vsel %vm932, %v925, %v927
      %v961 = vsel %vm932, %v927, %v929
      %v962 = vsel %vm932, %v929, %v931
      %vm983 = vcmask 293888
      %v985 = vsel %vm983, %v446, 0
      %v988 = vsel %vm681, %v953, 0
      %v991 = vsel %vm681, %v954, 0
      %v994 = vsel %vm681, %v955, 0
      %v997 = vsel %vm681, %v956, 0
      %v1000 = vsel %vm681, %v957, 0
      %v1003 = vsel %vm681, %v958, 0
      %v1006 = vsel %vm681, %v959, 0
      %v1009 = vsel %vm681, %v960, 0
      %v1012 = vsel %vm681, %v961, 0
      %v1015 = vsel %vm681, %v962, 0
      %1017 = vmatprep.subr.bf16.mxu0 0
      %1018 = vmatpush1.bf16.msra.mxu0 0
      %1019 = vmatprep.subr.bf16.mxu0 0
      %1020 = vmatpush1.bf16.msra.mxu0 0
      %1021 = vmatprep.subr.bf16.mxu0 0
      %1022 = vmatpush1.bf16.msra.mxu0 0
      %1023 = vmatprep.subr.bf16.mxu0 0
      %1024 = vmatpush1.bf16.msra.mxu0 0
      %1025 = vmatprep.subr.bf16.mxu0 0
      %1026 = vmatpush1.bf16.msra.mxu0 0
      %1027 = vmatprep.subr.bf16.mxu0 %v991
      %1028 = vmatpush1.bf16.msra.mxu0 %v988
      %1029 = vmatprep.subr.bf16.mxu0 %v944
      %1030 = vmatpush1.bf16.msra.mxu0 %v943
      %1031 = vmatprep.subr.bf16.mxu0 %v934
      %1032 = vmatpush1.bf16.msra.mxu0 %v933
      %1033 = vmatprep.subr.bf16.mxu0 0
      %1034 = vmatpush2.bf16.msra.mxu0 0
      %1035 = vmatprep.subr.bf16.mxu0 0
      %1036 = vmatpush2.bf16.msra.mxu0 0
      %1037 = vmatprep.subr.bf16.mxu0 0
      %1038 = vmatpush2.bf16.msra.mxu0 0
      %1039 = vmatprep.subr.bf16.mxu0 0
      %1040 = vmatpush2.bf16.msra.mxu0 0
      %1041 = vmatprep.subr.bf16.mxu0 0
      %1042 = vmatpush2.bf16.msra.mxu0 0
      %1043 = vmatprep.subr.bf16.mxu0 0
      %1044 = vmatpush2.bf16.msra.mxu0 0
      %1045 = vmatprep.subr.bf16.mxu0 0
      %1046 = vmatpush2.bf16.msra.mxu0 0
      %1047 = vmatprep.subr.bf16.mxu0 0
      %1048 = vmatpush2.bf16.msra.mxu0 0
      %1049 = vmatprep.mubr.bf16.mxu0 0
      %1050 = vmatmul.mubr.bf16.gmra.mxu0 %v985
      %v1051 = vpop.f32.mrf.mxu0
      %v1052 = vadd.f32 %v842, %v1051
      %v1053 = vpop.f32.mrf.mxu0
      %v1054 = vadd.f32 %v842, %v1053
      %v1055 = vpop.f32.mrf.mxu0
      %v1056 = vpop.f32.mrf.mxu0
      %1057 = vdwg.mxu0
      %1058 = vmatprep.subr.bf16.mxu0 0
      %1059 = vmatpush1.bf16.msra.mxu0 0
      %1060 = vmatprep.subr.bf16.mxu0 0
      %1061 = vmatpush1.bf16.msra.mxu0 0
      %1062 = vmatprep.subr.bf16.mxu0 0
      %1063 = vmatpush1.bf16.msra.mxu0 0
      %1064 = vmatprep.subr.bf16.mxu0 0
      %1065 = vmatpush1.bf16.msra.mxu0 0
      %1066 = vmatprep.subr.bf16.mxu0 0
      %1067 = vmatpush1.bf16.msra.mxu0 0
      %1068 = vmatprep.subr.bf16.mxu0 %v997
      %1069 = vmatpush1.bf16.msra.mxu0 %v994
      %1070 = vmatprep.subr.bf16.mxu0 %v946
      %1071 = vmatpush1.bf16.msra.mxu0 %v945
      %1072 = vmatprep.subr.bf16.mxu0 %v936
      %1073 = vmatpush1.bf16.msra.mxu0 %v935
      %1074 = vmatprep.subr.bf16.mxu0 0
      %1075 = vmatpush2.bf16.msra.mxu0 0
      %1076 = vmatprep.subr.bf16.mxu0 0
      %1077 = vmatpush2.bf16.msra.mxu0 0
      %1078 = vmatprep.subr.bf16.mxu0 0
      %1079 = vmatpush2.bf16.msra.mxu0 0
      %1080 = vmatprep.subr.bf16.mxu0 0
      %1081 = vmatpush2.bf16.msra.mxu0 0
      %1082 = vmatprep.subr.bf16.mxu0 0
      %1083 = vmatpush2.bf16.msra.mxu0 0
      %1084 = vmatprep.subr.bf16.mxu0 0
      %1085 = vmatpush2.bf16.msra.mxu0 0
      %1086 = vmatprep.subr.bf16.mxu0 0
      %1087 = vmatpush2.bf16.msra.mxu0 0
      %1088 = vmatprep.subr.bf16.mxu0 0
      %1089 = vmatpush2.bf16.msra.mxu0 0
      %1090 = vmatprep.mubr.bf16.mxu0 0
      %1091 = vmatmul.mubr.bf16.gmra.mxu0 %v985
      %v1092 = vpop.f32.mrf.mxu0
      %v1093 = vadd.f32 %v842, %v1092
      %v1094 = vpop.f32.mrf.mxu0
      %v1095 = vadd.f32 %v842, %v1094
      %v1096 = vpop.f32.mrf.mxu0
      %v1097 = vpop.f32.mrf.mxu0
      %1098 = vdwg.mxu0
      %1099 = vmatprep.subr.bf16.mxu0 0
      %1100 = vmatpush1.bf16.msra.mxu0 0
      %1101 = vmatprep.subr.bf16.mxu0 0
      %1102 = vmatpush1.bf16.msra.mxu0 0
      %1103 = vmatprep.subr.bf16.mxu0 0
      %1104 = vmatpush1.bf16.msra.mxu0 0
      %1105 = vmatprep.subr.bf16.mxu0 0
      %1106 = vmatpush1.bf16.msra.mxu0 0
      %1107 = vmatprep.subr.bf16.mxu0 0
      %1108 = vmatpush1.bf16.msra.mxu0 0
      %1109 = vmatprep.subr.bf16.mxu0 %v1003
      %1110 = vmatpush1.bf16.msra.mxu0 %v1000
      %1111 = vmatprep.subr.bf16.mxu0 %v948
      %1112 = vmatpush1.bf16.msra.mxu0 %v947
      %1113 = vmatprep.subr.bf16.mxu0 %v938
      %1114 = vmatpush1.bf16.msra.mxu0 %v937
      %1115 = vmatprep.subr.bf16.mxu0 0
      %1116 = vmatpush2.bf16.msra.mxu0 0
      %1117 = vmatprep.subr.bf16.mxu0 0
      %1118 = vmatpush2.bf16.msra.mxu0 0
      %1119 = vmatprep.subr.bf16.mxu0 0
      %1120 = vmatpush2.bf16.msra.mxu0 0
      %1121 = vmatprep.subr.bf16.mxu0 0
      %1122 = vmatpush2.bf16.msra.mxu0 0
      %1123 = vmatprep.subr.bf16.mxu0 0
      %1124 = vmatpush2.bf16.msra.mxu0 0
      %1125 = vmatprep.subr.bf16.mxu0 0
      %1126 = vmatpush2.bf16.msra.mxu0 0
      %1127 = vmatprep.subr.bf16.mxu0 0
      %1128 = vmatpush2.bf16.msra.mxu0 0
      %1129 = vmatprep.subr.bf16.mxu0 0
      %1130 = vmatpush2.bf16.msra.mxu0 0
      %1131 = vmatprep.mubr.bf16.mxu0 0
      %1132 = vmatmul.mubr.bf16.gmra.mxu0 %v985
      %v1133 = vpop.f32.mrf.mxu0
      %v1134 = vadd.f32 %v842, %v1133
      %v1135 = vpop.f32.mrf.mxu0
      %v1136 = vadd.f32 %v842, %v1135
      %v1137 = vpop.f32.mrf.mxu0
      %v1138 = vpop.f32.mrf.mxu0
      %1139 = vdwg.mxu0
      %1140 = vmatprep.subr.bf16.mxu0 0
      %1141 = vmatpush1.bf16.msra.mxu0 0
      %1142 = vmatprep.subr.bf16.mxu0 0
      %1143 = vmatpush1.bf16.msra.mxu0 0
      %1144 = vmatprep.subr.bf16.mxu0 0
      %1145 = vmatpush1.bf16.msra.mxu0 0
      %1146 = vmatprep.subr.bf16.mxu0 0
      %1147 = vmatpush1.bf16.msra.mxu0 0
      %1148 = vmatprep.subr.bf16.mxu0 0
      %1149 = vmatpush1.bf16.msra.mxu0 0
      %1150 = vmatprep.subr.bf16.mxu0 %v1009
      %1151 = vmatpush1.bf16.msra.mxu0 %v1006
      %1152 = vmatprep.subr.bf16.mxu0 %v950
      %1153 = vmatpush1.bf16.msra.mxu0 %v949
      %1154 = vmatprep.subr.bf16.mxu0 %v940
      %1155 = vmatpush1.bf16.msra.mxu0 %v939
      %1156 = vmatprep.subr.bf16.mxu0 0
      %1157 = vmatpush2.bf16.msra.mxu0 0
      %1158 = vmatprep.subr.bf16.mxu0 0
      %1159 = vmatpush2.bf16.msra.mxu0 0
      %1160 = vmatprep.subr.bf16.mxu0 0
      %1161 = vmatpush2.bf16.msra.mxu0 0
      %1162 = vmatprep.subr.bf16.mxu0 0
      %1163 = vmatpush2.bf16.msra.mxu0 0
      %1164 = vmatprep.subr.bf16.mxu0 0
      %1165 = vmatpush2.bf16.msra.mxu0 0
      %1166 = vmatprep.subr.bf16.mxu0 0
      %1167 = vmatpush2.bf16.msra.mxu0 0
      %1168 = vmatprep.subr.bf16.mxu0 0
      %1169 = vmatpush2.bf16.msra.mxu0 0
      %1170 = vmatprep.subr.bf16.mxu0 0
      %1171 = vmatpush2.bf16.msra.mxu0 0
      %1172 = vmatprep.mubr.bf16.mxu0 0
      %1173 = vmatmul.mubr.bf16.gmra.mxu0 %v985
      %v1174 = vpop.f32.mrf.mxu0
      %v1175 = vadd.f32 %v842, %v1174
      %v1176 = vpop.f32.mrf.mxu0
      %v1177 = vadd.f32 %v842, %v1176
      %v1178 = vpop.f32.mrf.mxu0
      %v1179 = vpop.f32.mrf.mxu0
      %1180 = vdwg.mxu0
      %1181 = vmatprep.subr.bf16.mxu0 0
      %1182 = vmatpush1.bf16.msra.mxu0 0
      %1183 = vmatprep.subr.bf16.mxu0 0
      %1184 = vmatpush1.bf16.msra.mxu0 0
      %1185 = vmatprep.subr.bf16.mxu0 0
      %1186 = vmatpush1.bf16.msra.mxu0 0
      %1187 = vmatprep.subr.bf16.mxu0 0
      %1188 = vmatpush1.bf16.msra.mxu0 0
      %1189 = vmatprep.subr.bf16.mxu0 0
      %1190 = vmatpush1.bf16.msra.mxu0 0
      %1191 = vmatprep.subr.bf16.mxu0 %v1015
      %1192 = vmatpush1.bf16.msra.mxu0 %v1012
      %1193 = vmatprep.subr.bf16.mxu0 %v952
      %1194 = vmatpush1.bf16.msra.mxu0 %v951
      %1195 = vmatprep.subr.bf16.mxu0 %v942
      %1196 = vmatpush1.bf16.msra.mxu0 %v941
      %1197 = vmatprep.subr.bf16.mxu0 0
      %1198 = vmatpush2.bf16.msra.mxu0 0
      %1199 = vmatprep.subr.bf16.mxu0 0
      %1200 = vmatpush2.bf16.msra.mxu0 0
      %1201 = vmatprep.subr.bf16.mxu0 0
      %1202 = vmatpush2.bf16.msra.mxu0 0
      %1203 = vmatprep.subr.bf16.mxu0 0
      %1204 = vmatpush2.bf16.msra.mxu0 0
      %1205 = vmatprep.subr.bf16.mxu0 0
      %1206 = vmatpush2.bf16.msra.mxu0 0
      %1207 = vmatprep.subr.bf16.mxu0 0
      %1208 = vmatpush2.bf16.msra.mxu0 0
      %1209 = vmatprep.subr.bf16.mxu0 0
      %1210 = vmatpush2.bf16.msra.mxu0 0
      %1211 = vmatprep.subr.bf16.mxu0 0
      %1212 = vmatpush2.bf16.msra.mxu0 0
      %1213 = vmatprep.mubr.bf16.mxu0 0
      %1214 = vmatmul.mubr.bf16.gmra.mxu0 %v985
      %v1215 = vpop.f32.mrf.mxu0
      %v1216 = vadd.f32 %v842, %v1215
      %v1217 = vpop.f32.mrf.mxu0
      %v1218 = vadd.f32 %v842, %v1217
      %v1219 = vpop.f32.mrf.mxu0
      %v1220 = vpop.f32.mrf.mxu0
      %1221 = vdwg.mxu0
      %v1222 = vmax.f32 %v1052, 0.0
      %v1223 = vmax.f32 %v1054, 0.0
      %v1224 = vmax.f32 %v1093, 0.0
      %v1225 = vmax.f32 %v1095, 0.0
      %v1226 = vmax.f32 %v1134, 0.0
      %v1227 = vmax.f32 %v1136, 0.0
      %v1228 = vmax.f32 %v1175, 0.0
      %v1229 = vmax.f32 %v1177, 0.0
      %v1230 = vmax.f32 %v1216, 0.0
      %v1231 = vmax.f32 %v1218, 0.0
      %v1232 = vld [vmem:[%s5] sm:$0xff]
      %v1233 = vld [vmem:[%s5 + $0x8] sm:$0x3]
      %v1236 = vlaneseq
      %v1237 = vshrl.u32 %v1236, 7
      %v1238 = vsub.s32 0, %v1237
      %v1239 = vrot.slane %v1232, %v1238
      %v1240 = vlaneseq
      %v1241 = vshrl.u32 %v1240, 7
      %v1242 = vsub.s32 1, %v1241
      %v1243 = vrot.slane %v1232, %v1242
      %v1244 = vlaneseq
      %v1245 = vshrl.u32 %v1244, 7
      %v1246 = vsub.s32 2, %v1245
      %v1247 = vrot.slane %v1232, %v1246
      %v1248 = vlaneseq
      %v1249 = vshrl.u32 %v1248, 7
      %v1250 = vsub.s32 3, %v1249
      %v1251 = vrot.slane %v1232, %v1250
      %v1252 = vlaneseq
      %v1253 = vshrl.u32 %v1252, 7
      %v1254 = vsub.s32 4, %v1253
      %v1255 = vrot.slane %v1232, %v1254
      %v1256 = vlaneseq
      %v1257 = vshrl.u32 %v1256, 7
      %v1258 = vsub.s32 5, %v1257
      %v1259 = vrot.slane %v1232, %v1258
      %v1260 = vlaneseq
      %v1261 = vshrl.u32 %v1260, 7
      %v1262 = vsub.s32 6, %v1261
      %v1263 = vrot.slane %v1232, %v1262
      %v1264 = vlaneseq
      %v1265 = vshrl.u32 %v1264, 7
      %v1266 = vsub.s32 7, %v1265
      %v1267 = vrot.slane %v1232, %v1266
      %v1268 = vlaneseq
      %v1269 = vshrl.u32 %v1268, 7
      %v1270 = vsub.s32 0, %v1269
      %v1271 = vrot.slane %v1233, %v1270
      %v1272 = vlaneseq
      %v1273 = vshrl.u32 %v1272, 7
      %v1274 = vsub.s32 1, %v1273
      %v1275 = vrot.slane %v1233, %v1274
      %v1286 = vmul.f32 %v1222, %v1239
      %v1287 = vmul.f32 %v1223, %v1243
      %v1288 = vmul.f32 %v1224, %v1247
      %v1289 = vmul.f32 %v1225, %v1251
      %v1290 = vmul.f32 %v1226, %v1255
      %v1291 = vmul.f32 %v1227, %v1259
      %v1292 = vmul.f32 %v1228, %v1263
      %v1293 = vmul.f32 %v1229, %v1267
      %v1294 = vmul.f32 %v1230, %v1271
      %v1295 = vmul.f32 %v1231, %v1275
      %v1296 = vpack.c.bf16 %v1286, %v1286
      %v1297 = vpack.c.bf16 %v1287, %v1287
      %v1298 = vpack.c.bf16 %v1288, %v1288
      %v1299 = vpack.c.bf16 %v1289, %v1289
      %v1300 = vpack.c.bf16 %v1290, %v1290
      %v1301 = vpack.c.bf16 %v1291, %v1291
      %v1302 = vpack.c.bf16 %v1292, %v1292
      %v1303 = vpack.c.bf16 %v1293, %v1293
      %v1304 = vpack.c.bf16 %v1294, %v1294
      %v1305 = vpack.c.bf16 %v1295, %v1295
      %v1316 = vcombine.low %v1296, %v1297
      %v1317 = vcombine.low %v1298, %v1299
      %v1319 = vunpack.c.l.s4 1983009808
      %v1320 = vunpack.c.0.s8 %v1319
      %v1321 = vlaneseq
      %v1322 = vshrl.u32 %v1321, 7
      %v1323 = vsub.s32 %v1320, %v1322
      %v1324 = vrot.slane %v1316, %v1323
      %v1326 = vunpack.c.l.s4 1983009808
      %v1327 = vunpack.c.0.s8 %v1326
      %v1328 = vlaneseq
      %v1329 = vshrl.u32 %v1328, 7
      %v1330 = vsub.s32 %v1327, %v1329
      %v1331 = vrot.slane %v1317, %v1330
      %v1332 = vcombine.low %v1324, %v1331
      %v1333 = vcombine.low %v1300, %v1301
      %v1334 = vcombine.low %v1302, %v1303
      %v1336 = vunpack.c.l.s4 1983009808
      %v1337 = vunpack.c.0.s8 %v1336
      %v1338 = vlaneseq
      %v1339 = vshrl.u32 %v1338, 7
      %v1340 = vsub.s32 %v1337, %v1339
      %v1341 = vrot.slane %v1333, %v1340
      %v1343 = vunpack.c.l.s4 1983009808
      %v1344 = vunpack.c.0.s8 %v1343
      %v1345 = vlaneseq
      %v1346 = vshrl.u32 %v1345, 7
      %v1347 = vsub.s32 %v1344, %v1346
      %v1348 = vrot.slane %v1334, %v1347
      %v1349 = vcombine.low %v1341, %v1348
      %v1350 = vcombine.low %v1304, %v1305
      %v1352 = vunpack.c.l.s4 1983009808
      %v1353 = vunpack.c.0.s8 %v1352
      %v1354 = vlaneseq
      %v1355 = vshrl.u32 %v1354, 7
      %v1356 = vsub.s32 %v1353, %v1355
      %v1357 = vrot.slane %v1350, %v1356
      %1361 = vst [vmem:[#allocation3 + $0x2] sm:$0xff] %v1332
      %1362 = vst [vmem:[#allocation3 + $0xa] sm:$0xff] %v1349
      %1363 = vst [vmem:[#allocation3 + $0x12] sm:$0xf] %v1357
      %1364 = vst [vmem:[#allocation3] sm:$0x3] 0
      %1365 = vst [vmem:[#allocation3 + $0x16] sm:$0x3] 0
      // Predicated region
      $region117: #{residual_block_nobn.1} parent=39 // pred_check
        %p1366 = pneg %p242
      $region118: #{residual_block_nobn.1} parent=39 // pred_check_branch
        %1368 = sbr.rel (%p1366) target = $region120
      $region119: #{residual_block_nobn.1} parent=39 // pred_region
        %1369 = vst [vmem:[#allocation3 + $0x2] sm:$0x3] 0
      $region120: #{residual_block_nobn.1} parent=39 // pred_fallthru
        _
      %p1370 = scmp.eq.s32.totalorder %s22, 1
      // Predicated region
      $region121: #{residual_block_nobn.1} parent=39 // pred_check
        %p1371 = pneg %p1370
      $region122: #{residual_block_nobn.1} parent=39 // pred_check_branch
        %1373 = sbr.rel (%p1371) target = $region124
      $region123: #{residual_block_nobn.1} parent=39 // pred_region
        %1374 = vst [vmem:[#allocation3 + $0x14] sm:$0x3] 0
      $region124: #{residual_block_nobn.1} parent=39 // pred_fallthru
        _
      %v1375 = vld [vmem:[%s3] sm:$0x3]
      %v1376 = vld [vmem:[#allocation3] sm:$0xff]
      %v1377 = vld [vmem:[#allocation3 + $0x8] sm:$0xff]
      %v1378 = vld [vmem:[#allocation3 + $0x10] sm:$0xff]
      %v1382 = vcombine.high %v1376, %v1376
      %v1384 = vunpack.c.l.s4 1983009808
      %v1385 = vunpack.c.0.s8 %v1384
      %v1386 = vlaneseq
      %v1387 = vshrl.u32 %v1386, 7
      %v1388 = vsub.s32 %v1385, %v1387
      %v1389 = vrot.slane %v1376, %v1388
      %v1391 = vunpack.c.l.s4 1983009808
      %v1392 = vunpack.c.0.s8 %v1391
      %v1393 = vlaneseq
      %v1394 = vshrl.u32 %v1393, 7
      %v1395 = vsub.s32 %v1392, %v1394
      %v1396 = vrot.slane %v1382, %v1395
      %v1397 = vcombine.high %v1389, %v1389
      %v1398 = vcombine.high %v1396, %v1396
      %v1399 = vcombine.high %v1377, %v1377
      %v1401 = vunpack.c.l.s4 1983009808
      %v1402 = vunpack.c.0.s8 %v1401
      %v1403 = vlaneseq
      %v1404 = vshrl.u32 %v1403, 7
      %v1405 = vsub.s32 %v1402, %v1404
      %v1406 = vrot.slane %v1377, %v1405
      %v1408 = vunpack.c.l.s4 1983009808
      %v1409 = vunpack.c.0.s8 %v1408
      %v1410 = vlaneseq
      %v1411 = vshrl.u32 %v1410, 7
      %v1412 = vsub.s32 %v1409, %v1411
      %v1413 = vrot.slane %v1399, %v1412
      %v1414 = vcombine.high %v1406, %v1406
      %v1415 = vcombine.high %v1413, %v1413
      %v1417 = vunpack.c.l.s4 1983009808
      %v1418 = vunpack.c.0.s8 %v1417
      %v1419 = vlaneseq
      %v1420 = vshrl.u32 %v1419, 7
      %v1421 = vsub.s32 %v1418, %v1420
      %v1422 = vrot.slane %v1378, %v1421
      %v1423 = vcombine.low %v1376, %v1376
      %v1425 = vunpack.c.l.s4 1983009808
      %v1426 = vunpack.c.0.s8 %v1425
      %v1427 = vlaneseq
      %v1428 = vshrl.u32 %v1427, 7
      %v1429 = vsub.s32 %v1426, %v1428
      %v1430 = vrot.slane %v1423, %v1429
      %v1431 = vcombine.high %v1430, %v1430
      %v1432 = vcombine.low %v1377, %v1377
      %v1434 = vunpack.c.l.s4 1983009808
      %v1435 = vunpack.c.0.s8 %v1434
      %v1436 = vlaneseq
      %v1437 = vshrl.u32 %v1436, 7
      %v1438 = vsub.s32 %v1435, %v1437
      %v1439 = vrot.slane %v1432, %v1438
      %v1440 = vcombine.high %v1439, %v1439
      %v1441 = vcombine.low %v1378, %v1378
      %v1443 = vunpack.c.l.s4 1983009808
      %v1444 = vunpack.c.0.s8 %v1443
      %v1445 = vlaneseq
      %v1446 = vshrl.u32 %v1445, 7
      %v1447 = vsub.s32 %v1444, %v1446
      %v1448 = vrot.slane %v1441, %v1447
      %1449 = vrot.lane.b32.xlu0 %v1431, 127
      %v1450 = vpop.permute.xlu0 %1449
      %1451 = vrot.lane.b32.xlu0 %v1389, 127
      %v1452 = vpop.permute.xlu0 %1451
      %1453 = vrot.lane.b32.xlu0 %v1397, 127
      %v1454 = vpop.permute.xlu0 %1453
      %1455 = vrot.lane.b32.xlu0 %v1439, 127
      %v1456 = vpop.permute.xlu0 %1455
      %1457 = vrot.lane.b32.xlu0 %v1440, 127
      %v1458 = vpop.permute.xlu0 %1457
      %1459 = vrot.lane.b32.xlu0 %v1406, 127
      %v1460 = vpop.permute.xlu0 %1459
      %1461 = vrot.lane.b32.xlu0 %v1414, 127
      %v1462 = vpop.permute.xlu0 %1461
      %1463 = vrot.lane.b32.xlu0 %v1448, 127
      %v1464 = vpop.permute.xlu0 %1463
      %v1465 = vsel %vm487, %v1450, %v1452
      %v1466 = vsel %vm487, %v1452, %v1454
      %v1467 = vsel %vm487, %v1454, %v1456
      %v1468 = vsel %vm487, %v1456, %v1458
      %v1469 = vsel %vm487, %v1458, %v1460
      %v1470 = vsel %vm487, %v1460, %v1462
      %v1471 = vsel %vm487, %v1462, %v1464
      %v1472 = vcombine.low %v1396, %v1396
      %v1473 = vcombine.low %v1406, %v1406
      %v1474 = vcombine.low %v1413, %v1413
      %v1475 = vcombine.low %v1422, %v1422
      %1476 = vrot.lane.b32.xlu0 %v1389, 126
      %v1477 = vpop.permute.xlu0 %1476
      %1478 = vrot.lane.b32.xlu0 %v1472, 126
      %v1479 = vpop.permute.xlu0 %1478
      %1480 = vrot.lane.b32.xlu0 %v1396, 126
      %v1481 = vpop.permute.xlu0 %1480
      %1482 = vrot.lane.b32.xlu0 %v1473, 126
      %v1483 = vpop.permute.xlu0 %1482
      %1484 = vrot.lane.b32.xlu0 %v1406, 126
      %v1485 = vpop.permute.xlu0 %1484
      %1486 = vrot.lane.b32.xlu0 %v1474, 126
      %v1487 = vpop.permute.xlu0 %1486
      %1488 = vrot.lane.b32.xlu0 %v1413, 126
      %v1489 = vpop.permute.xlu0 %1488
      %1490 = vrot.lane.b32.xlu0 %v1475, 126
      %v1491 = vpop.permute.xlu0 %1490
      %1492 = vrot.lane.b32.xlu0 %v1422, 126
      %v1493 = vpop.permute.xlu0 %1492
      %v1494 = vsel %vm531, %v1477, %v1479
      %v1495 = vsel %vm531, %v1479, %v1481
      %v1496 = vsel %vm531, %v1481, %v1483
      %v1497 = vsel %vm531, %v1483, %v1485
      %v1498 = vsel %vm531, %v1485, %v1487
      %v1499 = vsel %vm531, %v1487, %v1489
      %v1500 = vsel %vm531, %v1489, %v1491
      %v1501 = vsel %vm531, %v1491, %v1493
      %v1502 = vcombine.low %v1389, %v1389
      %v1503 = vcombine.low %v1439, %v1439
      %v1504 = vcombine.low %v1448, %v1448
      %v1505 = vcombine.high %v1422, %v1422
      %1506 = vrot.lane.b32.xlu0 %v1396, 127
      %v1507 = vpop.permute.xlu0 %1506
      %1508 = vrot.lane.b32.xlu0 %v1398, 127
      %v1509 = vpop.permute.xlu0 %1508
      %1510 = vrot.lane.b32.xlu0 %v1413, 127
      %v1511 = vpop.permute.xlu0 %1510
      %1512 = vrot.lane.b32.xlu0 %v1415, 127
      %v1513 = vpop.permute.xlu0 %1512
      %1514 = vrot.lane.b32.xlu0 %v1422, 127
      %v1515 = vpop.permute.xlu0 %1514
      %1516 = vrot.lane.b32.xlu0 %v1505, 127
      %v1517 = vpop.permute.xlu0 %1516
      %v1518 = vsel %vm487, %v1507, %v1509
      %v1519 = vsel %vm487, %v1509, %v1460
      %v1520 = vsel %vm487, %v1462, %v1511
      %v1521 = vsel %vm487, %v1511, %v1513
      %v1522 = vsel %vm487, %v1513, %v1515
      %v1523 = vsel %vm487, %v1515, %v1517
      %v1524 = vcombine.high %v1448, %v1448
      %1525 = vrot.lane.b32.xlu0 %v1397, 126
      %v1526 = vpop.permute.xlu0 %1525
      %1527 = vrot.lane.b32.xlu0 %v1439, 126
      %v1528 = vpop.permute.xlu0 %1527
      %1529 = vrot.lane.b32.xlu0 %v1440, 126
      %v1530 = vpop.permute.xlu0 %1529
      %1531 = vrot.lane.b32.xlu0 %v1414, 126
      %v1532 = vpop.permute.xlu0 %1531
      %1533 = vrot.lane.b32.xlu0 %v1448, 126
      %v1534 = vpop.permute.xlu0 %1533
      %1535 = vrot.lane.b32.xlu0 %v1524, 126
      %v1536 = vpop.permute.xlu0 %1535
      %v1537 = vsel %vm531, %v1477, %v1526
      %v1538 = vsel %vm531, %v1526, %v1528
      %v1539 = vsel %vm531, %v1528, %v1530
      %v1540 = vsel %vm531, %v1530, %v1485
      %v1541 = vsel %vm531, %v1485, %v1532
      %v1542 = vsel %vm531, %v1532, %v1534
      %v1543 = vsel %vm531, %v1534, %v1536
      %v1544 = vsel %vm531, %v1536, %v1493
      %v1545 = vcombine.high %v1378, %v1378
      %v1547 = vunpack.c.l.s4 1983009808
      %v1548 = vunpack.c.0.s8 %v1547
      %v1549 = vlaneseq
      %v1550 = vshrl.u32 %v1549, 7
      %v1551 = vsub.s32 %v1548, %v1550
      %v1552 = vrot.slane %v1545, %v1551
      %v1553 = vcombine.low %v1552, %v1552
      %1554 = vrot.lane.b32.xlu0 %v1503, 127
      %v1555 = vpop.permute.xlu0 %1554
      %1556 = vrot.lane.b32.xlu0 %v1473, 127
      %v1557 = vpop.permute.xlu0 %1556
      %1558 = vrot.lane.b32.xlu0 %v1504, 127
      %v1559 = vpop.permute.xlu0 %1558
      %1560 = vrot.lane.b32.xlu0 %v1475, 127
      %v1561 = vpop.permute.xlu0 %1560
      %v1562 = vsel %vm487, %v1452, %v1555
      %v1563 = vsel %vm487, %v1555, %v1456
      %v1564 = vsel %vm487, %v1456, %v1557
      %v1565 = vsel %vm487, %v1557, %v1460
      %v1566 = vsel %vm487, %v1460, %v1559
      %v1567 = vsel %vm487, %v1559, %v1464
      %v1568 = vsel %vm487, %v1464, %v1561
      %v1569 = vcombine.high %v1552, %v1552
      %1570 = vrot.lane.b32.xlu0 %v1398, 126
      %v1571 = vpop.permute.xlu0 %1570
      %1572 = vrot.lane.b32.xlu0 %v1415, 126
      %v1573 = vpop.permute.xlu0 %1572
      %1574 = vrot.lane.b32.xlu0 %v1505, 126
      %v1575 = vpop.permute.xlu0 %1574
      %1576 = vrot.lane.b32.xlu0 %v1552, 126
      %v1577 = vpop.permute.xlu0 %1576
      %1578 = vrot.lane.b32.xlu0 %v1569, 126
      %v1579 = vpop.permute.xlu0 %1578
      %v1580 = vsel %vm531, %v1571, %v1485
      %v1581 = vsel %vm531, %v1532, %v1489
      %v1582 = vsel %vm531, %v1489, %v1573
      %v1583 = vsel %vm531, %v1573, %v1493
      %v1584 = vsel %vm531, %v1493, %v1575
      %v1585 = vsel %vm531, %v1575, %v1577
      %v1586 = vsel %vm531, %v1577, %v1579
      %v1589 = vsel %vm681, %v1389, %v1450
      %v1592 = vsel %vm681, %v1397, %v1465
      %v1595 = vsel %vm681, %v1396, %v1466
      %v1598 = vsel %vm681, %v1398, %v1467
      %v1601 = vsel %vm681, %v1406, %v1468
      %v1604 = vsel %vm681, %v1414, %v1469
      %v1607 = vsel %vm681, %v1413, %v1470
      %v1610 = vsel %vm681, %v1415, %v1471
      %v1613 = vsel %vm681, %v1422, %v1464
      %v1615 = vsel %vm715, %v1589, %v1477
      %v1617 = vsel %vm715, %v1592, %v1494
      %v1619 = vsel %vm715, %v1595, %v1495
      %v1621 = vsel %vm715, %v1598, %v1496
      %v1623 = vsel %vm715, %v1601, %v1497
      %v1625 = vsel %vm715, %v1604, %v1498
      %v1627 = vsel %vm715, %v1607, %v1499
      %v1629 = vsel %vm715, %v1610, %v1500
      %v1631 = vsel %vm715, %v1613, %v1501
      %v1633 = vsel %vm738, %v1615, %v1430
      %v1635 = vsel %vm738, %v1617, %v1502
      %v1636 = vsel %vm738, %v1619, %v1389
      %v1638 = vsel %vm738, %v1621, %v1503
      %v1640 = vsel %vm738, %v1623, %v1439
      %v1642 = vsel %vm738, %v1625, %v1473
      %v1643 = vsel %vm738, %v1627, %v1406
      %v1645 = vsel %vm738, %v1629, %v1504
      %v1647 = vsel %vm738, %v1631, %v1448
      %v1649 = vsel %vm681, %v1507, %v1477
      %v1652 = vsel %vm681, %v1518, %v1537
      %v1655 = vsel %vm681, %v1519, %v1538
      %v1657 = vsel %vm681, %v1470, %v1539
      %v1660 = vsel %vm681, %v1520, %v1540
      %v1663 = vsel %vm681, %v1521, %v1541
      %v1666 = vsel %vm681, %v1522, %v1542
      %v1669 = vsel %vm681, %v1523, %v1543
      %v1672 = vsel %vm681, %v1517, %v1544
      %v1674 = vsel %vm715, %v1649, %v1472
      %v1675 = vsel %vm715, %v1652, %v1396
      %v1676 = vsel %vm715, %v1655, %v1473
      %v1677 = vsel %vm715, %v1657, %v1406
      %v1679 = vsel %vm715, %v1660, %v1474
      %v1680 = vsel %vm715, %v1663, %v1413
      %v1682 = vsel %vm715, %v1666, %v1475
      %v1683 = vsel %vm715, %v1669, %v1422
      %v1685 = vsel %vm715, %v1672, %v1553
      %v1687 = vsel %vm738, %v1674, %v1452
      %v1689 = vsel %vm738, %v1675, %v1562
      %v1691 = vsel %vm738, %v1676, %v1563
      %v1693 = vsel %vm738, %v1677, %v1564
      %v1695 = vsel %vm738, %v1679, %v1565
      %v1697 = vsel %vm738, %v1680, %v1566
      %v1699 = vsel %vm738, %v1682, %v1567
      %v1701 = vsel %vm738, %v1683, %v1568
      %v1703 = vsel %vm738, %v1685, %v1561
      %v1704 = vld [vmem:[%s4] sm:$0xf]
      %1706 = vset.pattern.permute.xlu0 0
      %1707 = vperm.xlu0 %1706, %v1704
      %v1708 = vpop.permute.xlu0 %1707
      %1728 = vrot.lane.b32.xlu0 %v1633, 1
      %v1729 = vpop.permute.xlu0 %1728
      %1730 = vrot.lane.b32.xlu0 %v1635, 1
      %v1731 = vpop.permute.xlu0 %1730
      %1732 = vrot.lane.b32.xlu0 %v1636, 1
      %v1733 = vpop.permute.xlu0 %1732
      %1734 = vrot.lane.b32.xlu0 %v1638, 1
      %v1735 = vpop.permute.xlu0 %1734
      %1736 = vrot.lane.b32.xlu0 %v1640, 1
      %v1737 = vpop.permute.xlu0 %1736
      %1738 = vrot.lane.b32.xlu0 %v1642, 1
      %v1739 = vpop.permute.xlu0 %1738
      %1740 = vrot.lane.b32.xlu0 %v1643, 1
      %v1741 = vpop.permute.xlu0 %1740
      %1742 = vrot.lane.b32.xlu0 %v1645, 1
      %v1743 = vpop.permute.xlu0 %1742
      %1744 = vrot.lane.b32.xlu0 %v1647, 1
      %v1745 = vpop.permute.xlu0 %1744
      %1746 = vrot.lane.b32.xlu0 %v1687, 1
      %v1747 = vpop.permute.xlu0 %1746
      %1748 = vrot.lane.b32.xlu0 %v1689, 1
      %v1749 = vpop.permute.xlu0 %1748
      %1750 = vrot.lane.b32.xlu0 %v1691, 1
      %v1751 = vpop.permute.xlu0 %1750
      %1752 = vrot.lane.b32.xlu0 %v1693, 1
      %v1753 = vpop.permute.xlu0 %1752
      %1754 = vrot.lane.b32.xlu0 %v1695, 1
      %v1755 = vpop.permute.xlu0 %1754
      %1756 = vrot.lane.b32.xlu0 %v1697, 1
      %v1757 = vpop.permute.xlu0 %1756
      %1758 = vrot.lane.b32.xlu0 %v1699, 1
      %v1759 = vpop.permute.xlu0 %1758
      %1760 = vrot.lane.b32.xlu0 %v1701, 1
      %v1761 = vpop.permute.xlu0 %1760
      %1762 = vrot.lane.b32.xlu0 %v1703, 1
      %v1763 = vpop.permute.xlu0 %1762
      %1764 = vrot.lane.b32.xlu0 %v1571, 1
      %v1765 = vpop.permute.xlu0 %1764
      %1766 = vrot.lane.b32.xlu0 %v1580, 1
      %v1767 = vpop.permute.xlu0 %1766
      %1768 = vrot.lane.b32.xlu0 %v1541, 1
      %v1769 = vpop.permute.xlu0 %1768
      %1770 = vrot.lane.b32.xlu0 %v1581, 1
      %v1771 = vpop.permute.xlu0 %1770
      %1772 = vrot.lane.b32.xlu0 %v1582, 1
      %v1773 = vpop.permute.xlu0 %1772
      %1774 = vrot.lane.b32.xlu0 %v1583, 1
      %v1775 = vpop.permute.xlu0 %1774
      %1776 = vrot.lane.b32.xlu0 %v1584, 1
      %v1777 = vpop.permute.xlu0 %1776
      %1778 = vrot.lane.b32.xlu0 %v1585, 1
      %v1779 = vpop.permute.xlu0 %1778
      %1780 = vrot.lane.b32.xlu0 %v1586, 1
      %v1781 = vpop.permute.xlu0 %1780
      %v1782 = vsel %vm932, %v1729, %v1731
      %v1783 = vsel %vm932, %v1731, %v1733
      %v1784 = vsel %vm932, %v1733, %v1735
      %v1785 = vsel %vm932, %v1735, %v1737
      %v1786 = vsel %vm932, %v1737, %v1739
      %v1787 = vsel %vm932, %v1739, %v1741
      %v1788 = vsel %vm932, %v1741, %v1743
      %v1789 = vsel %vm932, %v1743, %v1745
      %v1790 = vsel %vm932, %v1747, %v1749
      %v1791 = vsel %vm932, %v1749, %v1751
      %v1792 = vsel %vm932, %v1751, %v1753
      %v1793 = vsel %vm932, %v1753, %v1755
      %v1794 = vsel %vm932, %v1755, %v1757
      %v1795 = vsel %vm932, %v1757, %v1759
      %v1796 = vsel %vm932, %v1759, %v1761
      %v1797 = vsel %vm932, %v1761, %v1763
      %v1798 = vsel %vm932, %v1765, %v1767
      %v1799 = vsel %vm932, %v1767, %v1769
      %v1800 = vsel %vm932, %v1769, %v1771
      %v1801 = vsel %vm932, %v1771, %v1773
      %v1802 = vsel %vm932, %v1773, %v1775
      %v1803 = vsel %vm932, %v1775, %v1777
      %v1804 = vsel %vm932, %v1777, %v1779
      %v1805 = vsel %vm932, %v1779, %v1781
      %v1823 = vsel %vm983, %v1375, 0
      %v1826 = vsel %vm681, %v1798, 0
      %v1829 = vsel %vm681, %v1799, 0
      %v1832 = vsel %vm681, %v1800, 0
      %v1835 = vsel %vm681, %v1801, 0
      %v1838 = vsel %vm681, %v1802, 0
      %v1841 = vsel %vm681, %v1803, 0
      %v1844 = vsel %vm681, %v1804, 0
      %v1847 = vsel %vm681, %v1805, 0
      %1849 = vmatprep.subr.bf16.mxu0 0
      %1850 = vmatpush1.bf16.msra.mxu0 0
      %1851 = vmatprep.subr.bf16.mxu0 0
      %1852 = vmatpush1.bf16.msra.mxu0 0
      %1853 = vmatprep.subr.bf16.mxu0 0
      %1854 = vmatpush1.bf16.msra.mxu0 0
      %1855 = vmatprep.subr.bf16.mxu0 0
      %1856 = vmatpush1.bf16.msra.mxu0 0
      %1857 = vmatprep.subr.bf16.mxu0 0
      %1858 = vmatpush1.bf16.msra.mxu0 0
      %1859 = vmatprep.subr.bf16.mxu0 %v1829
      %1860 = vmatpush1.bf16.msra.mxu0 %v1826
      %1861 = vmatprep.subr.bf16.mxu0 %v1791
      %1862 = vmatpush1.bf16.msra.mxu0 %v1790
      %1863 = vmatprep.subr.bf16.mxu0 %v1783
      %1864 = vmatpush1.bf16.msra.mxu0 %v1782
      %1865 = vmatprep.subr.bf16.mxu0 0
      %1866 = vmatpush2.bf16.msra.mxu0 0
      %1867 = vmatprep.subr.bf16.mxu0 0
      %1868 = vmatpush2.bf16.msra.mxu0 0
      %1869 = vmatprep.subr.bf16.mxu0 0
      %1870 = vmatpush2.bf16.msra.mxu0 0
      %1871 = vmatprep.subr.bf16.mxu0 0
      %1872 = vmatpush2.bf16.msra.mxu0 0
      %1873 = vmatprep.subr.bf16.mxu0 0
      %1874 = vmatpush2.bf16.msra.mxu0 0
      %1875 = vmatprep.subr.bf16.mxu0 0
      %1876 = vmatpush2.bf16.msra.mxu0 0
      %1877 = vmatprep.subr.bf16.mxu0 0
      %1878 = vmatpush2.bf16.msra.mxu0 0
      %1879 = vmatprep.subr.bf16.mxu0 0
      %1880 = vmatpush2.bf16.msra.mxu0 0
      %1881 = vmatprep.mubr.bf16.mxu0 0
      %1882 = vmatmul.mubr.bf16.gmra.mxu0 %v1823
      %v1883 = vpop.f32.mrf.mxu0
      %v1884 = vadd.f32 %v1708, %v1883
      %v1885 = vpop.f32.mrf.mxu0
      %v1886 = vadd.f32 %v1708, %v1885
      %v1887 = vpop.f32.mrf.mxu0
      %v1888 = vpop.f32.mrf.mxu0
      %1889 = vdwg.mxu0
      %1890 = vmatprep.subr.bf16.mxu0 0
      %1891 = vmatpush1.bf16.msra.mxu0 0
      %1892 = vmatprep.subr.bf16.mxu0 0
      %1893 = vmatpush1.bf16.msra.mxu0 0
      %1894 = vmatprep.subr.bf16.mxu0 0
      %1895 = vmatpush1.bf16.msra.mxu0 0
      %1896 = vmatprep.subr.bf16.mxu0 0
      %1897 = vmatpush1.bf16.msra.mxu0 0
      %1898 = vmatprep.subr.bf16.mxu0 0
      %1899 = vmatpush1.bf16.msra.mxu0 0
      %1900 = vmatprep.subr.bf16.mxu0 %v1835
      %1901 = vmatpush1.bf16.msra.mxu0 %v1832
      %1902 = vmatprep.subr.bf16.mxu0 %v1793
      %1903 = vmatpush1.bf16.msra.mxu0 %v1792
      %1904 = vmatprep.subr.bf16.mxu0 %v1785
      %1905 = vmatpush1.bf16.msra.mxu0 %v1784
      %1906 = vmatprep.subr.bf16.mxu0 0
      %1907 = vmatpush2.bf16.msra.mxu0 0
      %1908 = vmatprep.subr.bf16.mxu0 0
      %1909 = vmatpush2.bf16.msra.mxu0 0
      %1910 = vmatprep.subr.bf16.mxu0 0
      %1911 = vmatpush2.bf16.msra.mxu0 0
      %1912 = vmatprep.subr.bf16.mxu0 0
      %1913 = vmatpush2.bf16.msra.mxu0 0
      %1914 = vmatprep.subr.bf16.mxu0 0
      %1915 = vmatpush2.bf16.msra.mxu0 0
      %1916 = vmatprep.subr.bf16.mxu0 0
      %1917 = vmatpush2.bf16.msra.mxu0 0
      %1918 = vmatprep.subr.bf16.mxu0 0
      %1919 = vmatpush2.bf16.msra.mxu0 0
      %1920 = vmatprep.subr.bf16.mxu0 0
      %1921 = vmatpush2.bf16.msra.mxu0 0
      %1922 = vmatprep.mubr.bf16.mxu0 0
      %1923 = vmatmul.mubr.bf16.gmra.mxu0 %v1823
      %v1924 = vpop.f32.mrf.mxu0
      %v1925 = vadd.f32 %v1708, %v1924
      %v1926 = vpop.f32.mrf.mxu0
      %v1927 = vadd.f32 %v1708, %v1926
      %v1928 = vpop.f32.mrf.mxu0
      %v1929 = vpop.f32.mrf.mxu0
      %1930 = vdwg.mxu0
      %1931 = vmatprep.subr.bf16.mxu0 0
      %1932 = vmatpush1.bf16.msra.mxu0 0
      %1933 = vmatprep.subr.bf16.mxu0 0
      %1934 = vmatpush1.bf16.msra.mxu0 0
      %1935 = vmatprep.subr.bf16.mxu0 0
      %1936 = vmatpush1.bf16.msra.mxu0 0
      %1937 = vmatprep.subr.bf16.mxu0 0
      %1938 = vmatpush1.bf16.msra.mxu0 0
      %1939 = vmatprep.subr.bf16.mxu0 0
      %1940 = vmatpush1.bf16.msra.mxu0 0
      %1941 = vmatprep.subr.bf16.mxu0 %v1841
      %1942 = vmatpush1.bf16.msra.mxu0 %v1838
      %1943 = vmatprep.subr.bf16.mxu0 %v1795
      %1944 = vmatpush1.bf16.msra.mxu0 %v1794
      %1945 = vmatprep.subr.bf16.mxu0 %v1787
      %1946 = vmatpush1.bf16.msra.mxu0 %v1786
      %1947 = vmatprep.subr.bf16.mxu0 0
      %1948 = vmatpush2.bf16.msra.mxu0 0
      %1949 = vmatprep.subr.bf16.mxu0 0
      %1950 = vmatpush2.bf16.msra.mxu0 0
      %1951 = vmatprep.subr.bf16.mxu0 0
      %1952 = vmatpush2.bf16.msra.mxu0 0
      %1953 = vmatprep.subr.bf16.mxu0 0
      %1954 = vmatpush2.bf16.msra.mxu0 0
      %1955 = vmatprep.subr.bf16.mxu0 0
      %1956 = vmatpush2.bf16.msra.mxu0 0
      %1957 = vmatprep.subr.bf16.mxu0 0
      %1958 = vmatpush2.bf16.msra.mxu0 0
      %1959 = vmatprep.subr.bf16.mxu0 0
      %1960 = vmatpush2.bf16.msra.mxu0 0
      %1961 = vmatprep.subr.bf16.mxu0 0
      %1962 = vmatpush2.bf16.msra.mxu0 0
      %1963 = vmatprep.mubr.bf16.mxu0 0
      %1964 = vmatmul.mubr.bf16.gmra.mxu0 %v1823
      %v1965 = vpop.f32.mrf.mxu0
      %v1966 = vadd.f32 %v1708, %v1965
      %v1967 = vpop.f32.mrf.mxu0
      %v1968 = vadd.f32 %v1708, %v1967
      %v1969 = vpop.f32.mrf.mxu0
      %v1970 = vpop.f32.mrf.mxu0
      %1971 = vdwg.mxu0
      %1972 = vmatprep.subr.bf16.mxu0 0
      %1973 = vmatpush1.bf16.msra.mxu0 0
      %1974 = vmatprep.subr.bf16.mxu0 0
      %1975 = vmatpush1.bf16.msra.mxu0 0
      %1976 = vmatprep.subr.bf16.mxu0 0
      %1977 = vmatpush1.bf16.msra.mxu0 0
      %1978 = vmatprep.subr.bf16.mxu0 0
      %1979 = vmatpush1.bf16.msra.mxu0 0
      %1980 = vmatprep.subr.bf16.mxu0 0
      %1981 = vmatpush1.bf16.msra.mxu0 0
      %1982 = vmatprep.subr.bf16.mxu0 %v1847
      %1983 = vmatpush1.bf16.msra.mxu0 %v1844
      %1984 = vmatprep.subr.bf16.mxu0 %v1797
      %1985 = vmatpush1.bf16.msra.mxu0 %v1796
      %1986 = vmatprep.subr.bf16.mxu0 %v1789
      %1987 = vmatpush1.bf16.msra.mxu0 %v1788
      %1988 = vmatprep.subr.bf16.mxu0 0
      %1989 = vmatpush2.bf16.msra.mxu0 0
      %1990 = vmatprep.subr.bf16.mxu0 0
      %1991 = vmatpush2.bf16.msra.mxu0 0
      %1992 = vmatprep.subr.bf16.mxu0 0
      %1993 = vmatpush2.bf16.msra.mxu0 0
      %1994 = vmatprep.subr.bf16.mxu0 0
      %1995 = vmatpush2.bf16.msra.mxu0 0
      %1996 = vmatprep.subr.bf16.mxu0 0
      %1997 = vmatpush2.bf16.msra.mxu0 0
      %1998 = vmatprep.subr.bf16.mxu0 0
      %1999 = vmatpush2.bf16.msra.mxu0 0
      %2000 = vmatprep.subr.bf16.mxu0 0
      %2001 = vmatpush2.bf16.msra.mxu0 0
      %2002 = vmatprep.subr.bf16.mxu0 0
      %2003 = vmatpush2.bf16.msra.mxu0 0
      %2004 = vmatprep.mubr.bf16.mxu0 0
      %2005 = vmatmul.mubr.bf16.gmra.mxu0 %v1823
      %v2006 = vpop.f32.mrf.mxu0
      %v2007 = vadd.f32 %v1708, %v2006
      %v2008 = vpop.f32.mrf.mxu0
      %v2009 = vadd.f32 %v1708, %v2008
      %v2010 = vpop.f32.mrf.mxu0
      %v2011 = vpop.f32.mrf.mxu0
      %2012 = vdwg.mxu0
      %v2013 = vadd.f32 %v1884, %v419
      %v2014 = vadd.f32 %v1886, %v406
      %v2015 = vadd.f32 %v1925, %v420
      %v2016 = vadd.f32 %v1927, %v407
      %v2017 = vadd.f32 %v1966, %v421
      %v2018 = vadd.f32 %v1968, %v408
      %v2019 = vadd.f32 %v2007, %v422
      %v2020 = vadd.f32 %v2009, %v409
      %v2029 = vcombine.low %v2013, %v2014
      %v2030 = vcombine.low %v2015, %v2016
      %v2031 = vcombine.low %v2017, %v2018
      %v2032 = vcombine.low %v2019, %v2020
      %2037 = vst [vmem:[%s227] sm:$0xff] %v2029
      %2038 = vst [vmem:[%s227 + $0x8] sm:$0xff] %v2030
      %2039 = vst [vmem:[%s227 + $0x10] sm:$0xff] %v2031
      %2040 = vst [vmem:[%s227 + $0x18] sm:$0xff] %v2032
      %s2041 = smul.u32 8, %s22
      %p2042 = scmp.lt.s32.totalorder %s21, 1
      %s2043 = scalar_select %p2042, %s21, 1
      %p2044 = scmp.lt.s32.totalorder %s2041, 15
      %s2045 = scalar_select %p2044, %s2041, 15
      %s2046 = smul.addr %s2043, 16
      %s2047 = sadd.s32 %s2045, %s2046
      %s2048 = smul.addr %s2047, 4
      %s2049 = scalar_lea.vmem %s6, %s2048
      // Predicated region
      $region125: #{residual_block_nobn.1} parent=39 // pred_check
        %p2050 = pneg %p154
      $region126: #{residual_block_nobn.1} parent=39 // pred_check_branch
        %2052 = sbr.rel (%p2050) target = $region128
      $region127: #{residual_block_nobn.1} parent=39 // pred_region
        %s2053 = smul.u32 8, %s22
      $region128: #{residual_block_nobn.1} parent=39 // pred_fallthru
        _
    $region40: #{residual_block_nobn.1} parent=5 // pred_fallthru
      _
    %p2054 = scmp.le.s32.totalorder 2, %s12
    // Predicated region
    $region129: #{residual_block_nobn.1} parent=5 // pred_check
      %p2055 = pneg %p2054
    $region130: #{residual_block_nobn.1} parent=5 // pred_check_branch
      %2057 = sbr.rel (%p2055) target = $region132
    $region131: #{residual_block_nobn.1} parent=5 // pred_region
      %s2058 = ssub.s32 %s12, 2
      // Predicated region
      $region133: #{residual_block_nobn.1} parent=131 // pred_check
        %p2059 = pneg %p160
      $region134: #{residual_block_nobn.1} parent=131 // pred_check_branch
        %2061 = sbr.rel (%p2059) target = $region136
      $region135: #{residual_block_nobn.1} parent=131 // pred_region
        %s2062 = smul.u32 8, %s24
        %p2063 = scmp.lt.s32.totalorder %s23, 1
        %s2064 = scalar_select %p2063, %s23, 1
        %p2065 = scmp.lt.s32.totalorder %s2062, 15
        %s2066 = scalar_select %p2065, %s2062, 15
        %s2067 = smul.addr %s2064, 16
        %s2068 = sadd.s32 %s2066, %s2067
        %s2069 = smul.addr %s2068, 4
        %s2070 = scalar_lea.vmem %s6, %s2069
      $region136: #{residual_block_nobn.1} parent=131 // pred_fallthru
        _
    $region132: #{residual_block_nobn.1} parent=5 // pred_fallthru
      _
  $region6: #{residual_block_nobn.1} parent=0 // loop_footer
    %s16 = sadd.s32 1, %s12
  $region7: #{residual_block_nobn.1} parent=0 // loop_footer_branch
    %11 = sbr.rel target = $region3
  $region8: #{residual_block_nobn.1} parent=0 // loop_exit
    _
  %2071 = vsyncmov [#allocation4]
  %s2072 = vpop.sfrf %2071
  %p2073 = scmp.eq.s32.totalorder %s2072, 0
  %p2074 = pneg %p2073
  %2076 = shalt.err (%p2074)
  %s2077 = scalar_lea.sflag [#allocation4], 1
  %2078 = vsyncmov %s2077
  %s2079 = vpop.sfrf %2078
  %p2080 = scmp.eq.s32.totalorder %s2079, 0
  %p2081 = pneg %p2080
  %2083 = shalt.err (%p2081)

</llo_original>
